<compile_context>
chip_gen: v6e
topology: v6e:2x2x1
jax: 0.10.0
libtpu: 0.0.40
codegen_flags: <defaults>
</compile_context>

<pallas_src>
import functools

import jax
import jax.numpy as jnp
import numpy as np
from jax.experimental import pallas as pl
from jax.experimental.pallas import tpu as pltpu


# ----------------------------------------------------------------------------
# Fused decoder kernel: one grid step processes NB batch elements.
# Row-pair packed layout: an image with R rows and L lanes/row is stored as
# (R//2, 2*L); packed row p = [row 2p | row 2p+1] along lanes.
# ----------------------------------------------------------------------------
def decoder_kernel(xprev_ref, x_ref, wdec_ref, bup_ref, w1m_ref, b1_ref,
                   w2m_ref, b2_ref, o_ref, cat_ref, h1p_ref,
                   *, NB, H2, W, h, w, cp, cout):
    f32 = jnp.float32
    wu = 2 * w                      # upsampled width
    up_off = 2 * W * cp             # lane offset of the upsample half of a cat row
    k1 = 2 * W * (cp + cout)        # cat lane width
    nout = 2 * W * cout             # conv output lane width
    blk_rows = H2 + 2               # packed rows per image incl. top/bottom pad

    zero_cat_row = jnp.zeros((1, k1), f32)
    zero_h1_row = jnp.zeros((1, nout), f32)

    for n in range(NB):             # static unroll over this step's images
        r0 = n * blk_rows
        # Pad rows must be zero (scratch is per-core and not zero-initialised);
        # every other scratch region below is fully overwritten each step.
        cat_ref[r0:r0 + 1, :] = zero_cat_row
        cat_ref[r0 + H2 + 1:r0 + H2 + 2, :] = zero_cat_row
        h1p_ref[r0:r0 + 1, :] = zero_h1_row
        h1p_ref[r0 + H2 + 1:r0 + H2 + 2, :] = zero_h1_row

        # --- skip connection: paste x_prev (already row-pair packed) ---------
        cat_ref[r0 + 1:r0 + 1 + H2, 0:up_off] = xprev_ref[n]

        # --- ConvTranspose2d(k=2, s=2): ONE matmul emits packed row pairs ----
        up = jnp.dot(x_ref[n], wdec_ref[...], preferred_element_type=f32)
        up = up + bup_ref[...]

        if wu < W or h < H2:
            # Replicate the module's zero-paste (h_diff/w_diff == 0 bug): the
            # upsampled map is pasted top-left into a zero buffer of x_prev's
            # spatial size.  Zero the gap, then paste each parity lane range.
            cat_ref[r0 + 1:r0 + 1 + H2, up_off:up_off + nout] = (
                jnp.zeros((H2, nout), f32))
            cat_ref[r0 + 1:r0 + 1 + h, up_off:up_off + wu * cout] = (
                up[:, :wu * cout])
            cat_ref[r0 + 1:r0 + 1 + h,
                    up_off + W * cout:up_off + W * cout + wu * cout] = (
                up[:, wu * cout:])
        else:
            # Full paste (2h == H, 2w == W): one lane-dense slab store.
            cat_ref[r0 + 1:r0 + 1 + h, up_off:up_off + nout] = up

    rm = NB * blk_rows - 2          # M of the row-shifted conv matmuls

    # --- block1: 3x3 conv + ReLU over [x_prev | upsampled] -------------------
    # Vertical taps = three row-shifted slabs of the padded scratch; horizontal
    # taps + channel contraction + channel concat are folded into w1m.
    acc1 = jnp.dot(cat_ref[0:rm, :], w1m_ref[0], preferred_element_type=f32)
    acc1 = acc1 + jnp.dot(cat_ref[1:1 + rm, :], w1m_ref[1],
                          preferred_element_type=f32)
    acc1 = acc1 + jnp.dot(cat_ref[2:2 + rm, :], w1m_ref[2],
                          preferred_element_type=f32)
    h1 = jnp.maximum(acc1 + b1_ref[...], 0.0)

    for n in range(NB):
        r0 = n * blk_rows
        h1p_ref[r0 + 1:r0 + 1 + H2, :] = h1[r0:r0 + H2, :]

    # --- block2: 3x3 conv + ReLU ---------------------------------------------
    acc2 = jnp.dot(h1p_ref[0:rm, :], w2m_ref[0], preferred_element_type=f32)
    acc2 = acc2 + jnp.dot(h1p_ref[1:1 + rm, :], w2m_ref[1],
                          preferred_element_type=f32)
    acc2 = acc2 + jnp.dot(h1p_ref[2:2 + rm, :], w2m_ref[2],
                          preferred_element_type=f32)
    out = jnp.maximum(acc2 + b2_ref[...], 0.0)

    for n in range(NB):
        r0 = n * blk_rows
        o_ref[n] = out[r0:r0 + H2, :]      # lane-dense (H2, 2*W*cout) store


# ----------------------------------------------------------------------------
# Host-side weight preprocessing (tiny, parameter-sized)
# ----------------------------------------------------------------------------
def _deconv_mat(up_w, up_b, w):
    """ConvTranspose2d(k=2, s=2) as a single block-diagonal matmul.

    wdec (w*Cin, 2*(2w)*Cout) maps one deep-feature row (lanes = (col, ci)) to
    the packed pair [even output row | odd output row], each (2w)*Cout lanes in
    (col, co) order; bup is the matching bias row.
    """
    cin, cout = up_w.shape[0], up_w.shape[1]
    eye_w = jnp.eye(w, dtype=up_w.dtype)
    parts = []
    for ki in range(2):                       # output-row parity
        # B[ci, kj*Cout + co] = up_w[ci, co, ki, kj]
        b = jnp.transpose(up_w[:, :, ki, :], (0, 2, 1)).reshape(cin, 2 * cout)
        parts.append(jnp.kron(eye_w, b))      # (w*Cin, 2w*Cout)
    wdec = jnp.concatenate(parts, axis=1)     # (w*Cin, 2*(2w)*Cout)
    bup = jnp.tile(up_b, 2 * (2 * w)).reshape(1, 2 * (2 * w) * cout)
    return wdec, bup


def _band_sum(wt, W, dy):
    """(W*c, W*co): folds the 3 horizontal taps + channel contraction of a 3x3
    'same' conv for vertical tap dy (input row at offset dy-1 from the output)."""
    cout, c = wt.shape[0], wt.shape[1]
    m = jnp.zeros((W * c, W * cout), wt.dtype)
    for dx in range(3):
        sel = jnp.eye(W, W, k=1 - dx, dtype=wt.dtype)  # out col j reads col j+dx-1
        m = m + jnp.kron(sel, wt[:, :, dy, dx].T)
    return m


def _packed_band_mats(wt, W):
    """Row-pair-packed band matrices for a 3x3 'same' conv: (3, 2*W*c, 2*W*co).

    Matrix d maps packed input row (p + d - 1) to its contribution to packed
    output row p, with row/col parity blocks carrying the correct vertical tap.
    """
    cout, c = wt.shape[0], wt.shape[1]
    z = jnp.zeros((W * c, W * cout), wt.dtype)
    s0 = _band_sum(wt, W, 0)
    s1 = _band_sum(wt, W, 1)
    s2 = _band_sum(wt, W, 2)

    def blk(a, b, cc, d):   # [[in-par0->out-par0, ->out-par1], [in-par1->...]]
        return jnp.concatenate([jnp.concatenate([a, b], axis=1),
                                jnp.concatenate([cc, d], axis=1)], axis=0)

    m_above = blk(z, z, s0, z)     # in parity 1 of the packed row above -> out parity 0
    m_same = blk(s1, s0, s2, s1)   # same packed row, all four parity pairs
    m_below = blk(z, s2, z, z)     # in parity 0 of the packed row below -> out parity 1
    return jnp.stack([m_above, m_same, m_below], axis=0)


def _pick_images_per_step(n_batch):
    """Fold images per grid step to amortize per-step overhead on single-TC
    chips while keeping >= 2 grid steps so both v7x TensorCores get work."""
    if n_batch <= 2:
        return 1
    for nb in range(n_batch // 2, 0, -1):
        if n_batch % nb == 0:
            return nb
    return 1


# ----------------------------------------------------------------------------
# Decoder forward (matches PyTorch semantics, incl. the h_diff/w_diff == 0 bug)
# ----------------------------------------------------------------------------
@jax.jit
def decoder_forward(x_prev_nchw, x_nchw, params):
    N, cp, H, W = x_prev_nchw.shape
    _, cin, h, w = x_nchw.shape
    cout = params["up_w"].shape[1]
    assert cp == cout and cin == 2 * cout
    assert 2 * h <= H and 2 * w <= W
    assert H % 2 == 0                      # required by the row-pair packing
    H2 = H // 2

    # Row-pair packed, channels-last layouts.  The reshapes after the
    # NCHW->NHWC transpose are free (row-major contiguity preserved).
    # TODO(synk): when composing into a full U-Net, keep activations in this
    # packed layout between stages instead of transposing per call.
    xprev_packed = jnp.transpose(x_prev_nchw, (0, 2, 3, 1)).reshape(
        N, H2, 2 * W * cp)
    x_r = jnp.transpose(x_nchw, (0, 2, 3, 1)).reshape(N, h, w * cin)

    wdec, bup = _deconv_mat(params["up_w"], params["up_b"], w)
    # conv1 input lanes are [x_prev pair | upsampled pair]; stacking the two
    # packed band matrices along K fuses the channel concat into the matmul.
    w1m = jnp.concatenate([_packed_band_mats(params["w1"][:, :cout], W),
                           _packed_band_mats(params["w1"][:, cout:], W)], axis=1)
    b1 = jnp.tile(params["b1"], 2 * W).reshape(1, 2 * W * cout)
    w2m = _packed_band_mats(params["w2"], W)
    b2 = jnp.tile(params["b2"], 2 * W).reshape(1, 2 * W * cout)

    NB = _pick_images_per_step(N)
    assert N % NB == 0
    nout = 2 * W * cout

    kernel = functools.partial(decoder_kernel, NB=NB, H2=H2, W=W, h=h, w=w,
                               cp=cp, cout=cout)
    out_packed = pl.pallas_call(
        kernel,
        out_shape=jax.ShapeDtypeStruct((N, H2, nout), jnp.float32),
        grid=(N // NB,),
        in_specs=[
            pl.BlockSpec((NB, H2, 2 * W * cp), lambda b: (b, 0, 0)),
            pl.BlockSpec((NB, h, w * cin), lambda b: (b, 0, 0)),
            pl.BlockSpec((w * cin, 2 * (2 * w) * cout), lambda b: (0, 0)),
            pl.BlockSpec((1, 2 * (2 * w) * cout), lambda b: (0, 0)),
            pl.BlockSpec((3, 2 * W * cin, nout), lambda b: (0, 0, 0)),
            pl.BlockSpec((1, nout), lambda b: (0, 0)),
            pl.BlockSpec((3, nout, nout), lambda b: (0, 0, 0)),
            pl.BlockSpec((1, nout), lambda b: (0, 0)),
        ],
        out_specs=pl.BlockSpec((NB, H2, nout), lambda b: (b, 0, 0)),
        scratch_shapes=[
            pltpu.VMEM((NB * (H2 + 2), 2 * W * cin), jnp.float32),  # [x_prev | up]
            pltpu.VMEM((NB * (H2 + 2), nout), jnp.float32),         # padded h1
        ],
        compiler_params=pltpu.CompilerParams(
            dimension_semantics=("parallel",)),
    )(xprev_packed, x_r, wdec, bup, w1m, b1, w2m, b2)

    out = out_packed.reshape(N, H, W, cout)          # free (row-major) reshape
    return jnp.transpose(out, (0, 3, 1, 2))          # back to NCHW


# ----------------------------------------------------------------------------
# Pure-JAX reference (lax convs) for validation
# ----------------------------------------------------------------------------
def reference_forward(x_prev_nchw, x_nchw, params):
    dn = ("NHWC", "HWIO", "NHWC")
    x_prev = jnp.transpose(x_prev_nchw, (0, 2, 3, 1))
    x = jnp.transpose(x_nchw, (0, 2, 3, 1))

    # ConvTranspose2d(k=2, s=2) as lhs-dilated conv with flipped kernel.
    wt = params["up_w"][:, :, ::-1, ::-1]            # (Cin, Cout, 2, 2) flipped
    w_hwio = jnp.transpose(wt, (2, 3, 0, 1))
    x_up = jax.lax.conv_general_dilated(
        x, w_hwio, window_strides=(1, 1), padding=[(1, 1), (1, 1)],
        lhs_dilation=(2, 2), dimension_numbers=dn) + params["up_b"]

    Hu, Wu = x_up.shape[1], x_up.shape[2]
    x_tmp = jnp.zeros_like(x_prev)
    x_tmp = x_tmp.at[:, 0:Hu, 0:Wu, :].set(x_up)
    xcat = jnp.concatenate([x_prev, x_tmp], axis=-1)

    def c3(hh, wgt, b):
        w_hwio = jnp.transpose(wgt, (2, 3, 1, 0))
        y = jax.lax.conv_general_dilated(
            hh, w_hwio, window_strides=(1, 1), padding="SAME",
            dimension_numbers=dn) + b
        return jnp.maximum(y, 0.0)

    h1 = c3(xcat, params["w1"], params["b1"])
    h2 = c3(h1, params["w2"], params["b2"])
    return jnp.transpose(h2, (0, 3, 1, 2))


# ----------------------------------------------------------------------------
if __name__ == "__main__":
    key = jax.random.PRNGKey(0)
    ks = jax.random.split(key, 8)

    N = 2
    in_channels, out_channels = 8, 4
    Hs = Ws = 16                                      # skip-connection spatial
    # x_prev: skip features (out_channels); x: deep features (in_channels, half res)
    x_prev = jax.random.normal(ks[0], (N, out_channels, Hs, Ws), jnp.float32)
    x = jax.random.normal(ks[1], (N, in_channels, Hs // 2, Ws // 2), jnp.float32)

    params = dict(
        up_w=0.1 * jax.random.normal(ks[2], (in_channels, out_channels, 2, 2), jnp.float32),
        up_b=0.1 * jax.random.normal(ks[3], (out_channels,), jnp.float32),
        w1=0.1 * jax.random.normal(ks[4], (out_channels, in_channels, 3, 3), jnp.float32),
        b1=0.1 * jax.random.normal(ks[5], (out_channels,), jnp.float32),
        w2=0.1 * jax.random.normal(ks[6], (out_channels, out_channels, 3, 3), jnp.float32),
        b2=0.1 * jax.random.normal(ks[7], (out_channels,), jnp.float32),
    )

    out = jax.block_until_ready(decoder_forward(x_prev, x, params))
    assert out.shape == (N, out_channels, Hs, Ws)

    ref = jax.block_until_ready(reference_forward(x_prev, x, params))
    np.testing.assert_allclose(np.asarray(out), np.asarray(ref), rtol=1e-4, atol=1e-4)

    print("KERNEL_OK")
</pallas_src>

<mosaic_0001>
module attributes {stable_mosaic.version = 11 : i64} {
  func.func @decoder_kernel(%arg0: i32, %arg1: memref<1x8x128xf32, #tpu.memory_space<vmem>>, %arg2: memref<1x8x64xf32, #tpu.memory_space<vmem>>, %arg3: memref<64x128xf32, #tpu.memory_space<vmem>>, %arg4: memref<1x128xf32, #tpu.memory_space<vmem>>, %arg5: memref<3x256x128xf32, #tpu.memory_space<vmem>>, %arg6: memref<1x128xf32, #tpu.memory_space<vmem>>, %arg7: memref<3x128x128xf32, #tpu.memory_space<vmem>>, %arg8: memref<1x128xf32, #tpu.memory_space<vmem>>, %arg9: memref<1x8x128xf32, #tpu.memory_space<vmem>>, %arg10: memref<10x256xf32, #tpu.memory_space<vmem>>, %arg11: memref<10x128xf32, #tpu.memory_space<vmem>>) attributes {dimension_semantics = [#tpu.dimension_semantics<parallel>], iteration_bounds = array<i64: 2>, scalar_prefetch = 0 : i64, scratch_operands = 2 : i64, tpu.core_type = #tpu.core_type<tc>, window_params = [{transform_indices = @transform_0, window_bounds = array<i64: 1, 8, 128>}, {transform_indices = @transform_1, window_bounds = array<i64: 1, 8, 64>}, {pipeline_mode = #tpu.pipeline_mode<synchronous>, transform_indices = @transform_2, window_bounds = array<i64: 64, 128>}, {pipeline_mode = #tpu.pipeline_mode<synchronous>, transform_indices = @transform_3, window_bounds = array<i64: 1, 128>}, {pipeline_mode = #tpu.pipeline_mode<synchronous>, transform_indices = @transform_4, window_bounds = array<i64: 3, 256, 128>}, {pipeline_mode = #tpu.pipeline_mode<synchronous>, transform_indices = @transform_5, window_bounds = array<i64: 1, 128>}, {pipeline_mode = #tpu.pipeline_mode<synchronous>, transform_indices = @transform_6, window_bounds = array<i64: 3, 128, 128>}, {pipeline_mode = #tpu.pipeline_mode<synchronous>, transform_indices = @transform_7, window_bounds = array<i64: 1, 128>}, {transform_indices = @transform_8, window_bounds = array<i64: 1, 8, 128>}]} {
    %cst = arith.constant 0.000000e+00 : f32
    %0 = vector.broadcast %cst : f32 to vector<1x256xf32>
    %cst_0 = arith.constant 0.000000e+00 : f32
    %1 = vector.broadcast %cst_0 : f32 to vector<1x128xf32>
    %c0 = arith.constant 0 : index
    %c0_1 = arith.constant 0 : index
    %2 = vector.load %arg10[%c0, %c0_1] : memref<10x256xf32, #tpu.memory_space<vmem>>, vector<1x256xf32>
    tpu.vector_store %arg10[%c0, %c0_1], %0 {strides = array<i32>} : memref<10x256xf32, #tpu.memory_space<vmem>>, vector<1x256xf32>,
    %c9 = arith.constant 9 : index
    %c0_2 = arith.constant 0 : index
    %3 = vector.load %arg10[%c9, %c0_2] : memref<10x256xf32, #tpu.memory_space<vmem>>, vector<1x256xf32>
    tpu.vector_store %arg10[%c9, %c0_2], %0 {strides = array<i32>} : memref<10x256xf32, #tpu.memory_space<vmem>>, vector<1x256xf32>,
    %c0_3 = arith.constant 0 : index
    %c0_4 = arith.constant 0 : index
    %4 = vector.load %arg11[%c0_3, %c0_4] : memref<10x128xf32, #tpu.memory_space<vmem>>, vector<1x128xf32>
    tpu.vector_store %arg11[%c0_3, %c0_4], %1 {strides = array<i32>} : memref<10x128xf32, #tpu.memory_space<vmem>>, vector<1x128xf32>,
    %c9_5 = arith.constant 9 : index
    %c0_6 = arith.constant 0 : index
    %5 = vector.load %arg11[%c9_5, %c0_6] : memref<10x128xf32, #tpu.memory_space<vmem>>, vector<1x128xf32>
    tpu.vector_store %arg11[%c9_5, %c0_6], %1 {strides = array<i32>} : memref<10x128xf32, #tpu.memory_space<vmem>>, vector<1x128xf32>,
    %c0_7 = arith.constant 0 : index
    %c0_8 = arith.constant 0 : index
    %c0_9 = arith.constant 0 : index
    %6 = vector.load %arg1[%c0_7, %c0_8, %c0_9] : memref<1x8x128xf32, #tpu.memory_space<vmem>>, vector<1x8x128xf32>
    %7 = vector.shape_cast %6 : vector<1x8x128xf32> to vector<8x128xf32>
    %c1 = arith.constant 1 : index
    %c0_10 = arith.constant 0 : index
    %8 = vector.load %arg10[%c1, %c0_10] : memref<10x256xf32, #tpu.memory_space<vmem>>, vector<8x128xf32>
    tpu.vector_store %arg10[%c1, %c0_10], %7 {strides = array<i32>} : memref<10x256xf32, #tpu.memory_space<vmem>>, vector<8x128xf32>,
    %c0_11 = arith.constant 0 : index
    %c0_12 = arith.constant 0 : index
    %c0_13 = arith.constant 0 : index
    %9 = vector.load %arg2[%c0_11, %c0_12, %c0_13] : memref<1x8x64xf32, #tpu.memory_space<vmem>>, vector<1x8x64xf32>
    %10 = vector.shape_cast %9 : vector<1x8x64xf32> to vector<8x64xf32>
    %c0_14 = arith.constant 0 : index
    %c0_15 = arith.constant 0 : index
    %11 = vector.load %arg3[%c0_14, %c0_15] : memref<64x128xf32, #tpu.memory_space<vmem>>, vector<64x128xf32>
    %cst_16 = arith.constant dense<0.000000e+00> : vector<8x128xf32>
    %12 = tpu.matmul %10, %11, %cst_16 {dimension_numbers = #tpu.dot_dimension_numbers<[1], [0], [0], [1], [0, 0, 1, 1], [], []>} : vector<8x64xf32>, vector<64x128xf32>, vector<8x128xf32> -> vector<8x128xf32>
    %c0_17 = arith.constant 0 : index
    %c0_18 = arith.constant 0 : index
    %13 = vector.load %arg4[%c0_17, %c0_18] : memref<1x128xf32, #tpu.memory_space<vmem>>, vector<1x128xf32>
    %14 = vector.broadcast %13 : vector<1x128xf32> to vector<8x128xf32>
    %15 = arith.addf %12, %14 : vector<8x128xf32>
    %c1_19 = arith.constant 1 : index
    %c128 = arith.constant 128 : index
    %16 = vector.load %arg10[%c1_19, %c128] : memref<10x256xf32, #tpu.memory_space<vmem>>, vector<8x128xf32>
    tpu.vector_store %arg10[%c1_19, %c128], %15 {strides = array<i32>} : memref<10x256xf32, #tpu.memory_space<vmem>>, vector<8x128xf32>,
    %c0_20 = arith.constant 0 : index
    %c0_21 = arith.constant 0 : index
    %17 = vector.load %arg10[%c0_20, %c0_21] : memref<10x256xf32, #tpu.memory_space<vmem>>, vector<8x256xf32>
    %c0_22 = arith.constant 0 : index
    %c0_23 = arith.constant 0 : index
    %c0_24 = arith.constant 0 : index
    %18 = vector.load %arg5[%c0_22, %c0_23, %c0_24] : memref<3x256x128xf32, #tpu.memory_space<vmem>>, vector<1x256x128xf32>
    %19 = vector.shape_cast %18 : vector<1x256x128xf32> to vector<256x128xf32>
    %cst_25 = arith.constant dense<0.000000e+00> : vector<8x128xf32>
    %20 = tpu.matmul %17, %19, %cst_25 {dimension_numbers = #tpu.dot_dimension_numbers<[1], [0], [0], [1], [0, 0, 1, 1], [], []>} : vector<8x256xf32>, vector<256x128xf32>, vector<8x128xf32> -> vector<8x128xf32>
    %c1_26 = arith.constant 1 : index
    %c0_27 = arith.constant 0 : index
    %21 = vector.load %arg10[%c1_26, %c0_27] : memref<10x256xf32, #tpu.memory_space<vmem>>, vector<8x256xf32>
    %c1_28 = arith.constant 1 : index
    %c0_29 = arith.constant 0 : index
    %c0_30 = arith.constant 0 : index
    %22 = vector.load %arg5[%c1_28, %c0_29, %c0_30] : memref<3x256x128xf32, #tpu.memory_space<vmem>>, vector<1x256x128xf32>
    %23 = vector.shape_cast %22 : vector<1x256x128xf32> to vector<256x128xf32>
    %cst_31 = arith.constant dense<0.000000e+00> : vector<8x128xf32>
    %24 = tpu.matmul %21, %23, %cst_31 {dimension_numbers = #tpu.dot_dimension_numbers<[1], [0], [0], [1], [0, 0, 1, 1], [], []>} : vector<8x256xf32>, vector<256x128xf32>, vector<8x128xf32> -> vector<8x128xf32>
    %25 = arith.addf %20, %24 : vector<8x128xf32>
    %c2 = arith.constant 2 : index
    %c0_32 = arith.constant 0 : index
    %26 = vector.load %arg10[%c2, %c0_32] : memref<10x256xf32, #tpu.memory_space<vmem>>, vector<8x256xf32>
    %c2_33 = arith.constant 2 : index
    %c0_34 = arith.constant 0 : index
    %c0_35 = arith.constant 0 : index
    %27 = vector.load %arg5[%c2_33, %c0_34, %c0_35] : memref<3x256x128xf32, #tpu.memory_space<vmem>>, vector<1x256x128xf32>
    %28 = vector.shape_cast %27 : vector<1x256x128xf32> to vector<256x128xf32>
    %cst_36 = arith.constant dense<0.000000e+00> : vector<8x128xf32>
    %29 = tpu.matmul %26, %28, %cst_36 {dimension_numbers = #tpu.dot_dimension_numbers<[1], [0], [0], [1], [0, 0, 1, 1], [], []>} : vector<8x256xf32>, vector<256x128xf32>, vector<8x128xf32> -> vector<8x128xf32>
    %30 = arith.addf %25, %29 : vector<8x128xf32>
    %c0_37 = arith.constant 0 : index
    %c0_38 = arith.constant 0 : index
    %31 = vector.load %arg6[%c0_37, %c0_38] : memref<1x128xf32, #tpu.memory_space<vmem>>, vector<1x128xf32>
    %32 = vector.broadcast %31 : vector<1x128xf32> to vector<8x128xf32>
    %33 = arith.addf %30, %32 : vector<8x128xf32>
    %cst_39 = arith.constant 0.000000e+00 : f32
    %34 = vector.broadcast %cst_39 : f32 to vector<8x128xf32>
    %35 = arith.maximumf %33, %34 : vector<8x128xf32>
    %c1_40 = arith.constant 1 : index
    %c0_41 = arith.constant 0 : index
    %36 = vector.load %arg11[%c1_40, %c0_41] : memref<10x128xf32, #tpu.memory_space<vmem>>, vector<8x128xf32>
    tpu.vector_store %arg11[%c1_40, %c0_41], %35 {strides = array<i32>} : memref<10x128xf32, #tpu.memory_space<vmem>>, vector<8x128xf32>,
    %c0_42 = arith.constant 0 : index
    %c0_43 = arith.constant 0 : index
    %37 = vector.load %arg11[%c0_42, %c0_43] : memref<10x128xf32, #tpu.memory_space<vmem>>, vector<8x128xf32>
    %c0_44 = arith.constant 0 : index
    %c0_45 = arith.constant 0 : index
    %c0_46 = arith.constant 0 : index
    %38 = vector.load %arg7[%c0_44, %c0_45, %c0_46] : memref<3x128x128xf32, #tpu.memory_space<vmem>>, vector<1x128x128xf32>
    %39 = vector.shape_cast %38 : vector<1x128x128xf32> to vector<128x128xf32>
    %cst_47 = arith.constant dense<0.000000e+00> : vector<8x128xf32>
    %40 = tpu.matmul %37, %39, %cst_47 {dimension_numbers = #tpu.dot_dimension_numbers<[1], [0], [0], [1], [0, 0, 1, 1], [], []>} : vector<8x128xf32>, vector<128x128xf32>, vector<8x128xf32> -> vector<8x128xf32>
    %c1_48 = arith.constant 1 : index
    %c0_49 = arith.constant 0 : index
    %41 = vector.load %arg11[%c1_48, %c0_49] : memref<10x128xf32, #tpu.memory_space<vmem>>, vector<8x128xf32>
    %c1_50 = arith.constant 1 : index
    %c0_51 = arith.constant 0 : index
    %c0_52 = arith.constant 0 : index
    %42 = vector.load %arg7[%c1_50, %c0_51, %c0_52] : memref<3x128x128xf32, #tpu.memory_space<vmem>>, vector<1x128x128xf32>
    %43 = vector.shape_cast %42 : vector<1x128x128xf32> to vector<128x128xf32>
    %cst_53 = arith.constant dense<0.000000e+00> : vector<8x128xf32>
    %44 = tpu.matmul %41, %43, %cst_53 {dimension_numbers = #tpu.dot_dimension_numbers<[1], [0], [0], [1], [0, 0, 1, 1], [], []>} : vector<8x128xf32>, vector<128x128xf32>, vector<8x128xf32> -> vector<8x128xf32>
    %45 = arith.addf %40, %44 : vector<8x128xf32>
    %c2_54 = arith.constant 2 : index
    %c0_55 = arith.constant 0 : index
    %46 = vector.load %arg11[%c2_54, %c0_55] : memref<10x128xf32, #tpu.memory_space<vmem>>, vector<8x128xf32>
    %c2_56 = arith.constant 2 : index
    %c0_57 = arith.constant 0 : index
    %c0_58 = arith.constant 0 : index
    %47 = vector.load %arg7[%c2_56, %c0_57, %c0_58] : memref<3x128x128xf32, #tpu.memory_space<vmem>>, vector<1x128x128xf32>
    %48 = vector.shape_cast %47 : vector<1x128x128xf32> to vector<128x128xf32>
    %cst_59 = arith.constant dense<0.000000e+00> : vector<8x128xf32>
    %49 = tpu.matmul %46, %48, %cst_59 {dimension_numbers = #tpu.dot_dimension_numbers<[1], [0], [0], [1], [0, 0, 1, 1], [], []>} : vector<8x128xf32>, vector<128x128xf32>, vector<8x128xf32> -> vector<8x128xf32>
    %50 = arith.addf %45, %49 : vector<8x128xf32>
    %c0_60 = arith.constant 0 : index
    %c0_61 = arith.constant 0 : index
    %51 = vector.load %arg8[%c0_60, %c0_61] : memref<1x128xf32, #tpu.memory_space<vmem>>, vector<1x128xf32>
    %52 = vector.broadcast %51 : vector<1x128xf32> to vector<8x128xf32>
    %53 = arith.addf %50, %52 : vector<8x128xf32>
    %cst_62 = arith.constant 0.000000e+00 : f32
    %54 = vector.broadcast %cst_62 : f32 to vector<8x128xf32>
    %55 = arith.maximumf %53, %54 : vector<8x128xf32>
    %c0_63 = arith.constant 0 : index
    %c0_64 = arith.constant 0 : index
    %c0_65 = arith.constant 0 : index
    %56 = vector.load %arg9[%c0_63, %c0_64, %c0_65] : memref<1x8x128xf32, #tpu.memory_space<vmem>>, vector<1x8x128xf32>
    %57 = vector.shape_cast %56 : vector<1x8x128xf32> to vector<8x128xf32>
    %58 = vector.shape_cast %55 : vector<8x128xf32> to vector<1x8x128xf32>
    tpu.vector_store %arg9[%c0_63, %c0_64, %c0_65], %58 {strides = array<i32>} : memref<1x8x128xf32, #tpu.memory_space<vmem>>, vector<1x8x128xf32>,
    return
  }
  func.func @transform_0(%arg0: i32) -> (i32, i32, i32) {
    %c0_i32 = arith.constant 0 : i32
    %c0_i32_0 = arith.constant 0 : i32
    %c0_i32_1 = arith.constant 0 : i32
    return %arg0, %c0_i32, %c0_i32_0 : i32, i32, i32
  }
  func.func @transform_1(%arg0: i32) -> (i32, i32, i32) {
    %c0_i32 = arith.constant 0 : i32
    %c0_i32_0 = arith.constant 0 : i32
    %c0_i32_1 = arith.constant 0 : i32
    return %arg0, %c0_i32, %c0_i32_0 : i32, i32, i32
  }
  func.func @transform_2(%arg0: i32) -> (i32, i32) {
    %c0_i32 = arith.constant 0 : i32
    %c0_i32_0 = arith.constant 0 : i32
    %c0_i32_1 = arith.constant 0 : i32
    return %c0_i32, %c0_i32_0 : i32, i32
  }
  func.func @transform_3(%arg0: i32) -> (i32, i32) {
    %c0_i32 = arith.constant 0 : i32
    %c0_i32_0 = arith.constant 0 : i32
    %c0_i32_1 = arith.constant 0 : i32
    return %c0_i32, %c0_i32_0 : i32, i32
  }
  func.func @transform_4(%arg0: i32) -> (i32, i32, i32) {
    %c0_i32 = arith.constant 0 : i32
    %c0_i32_0 = arith.constant 0 : i32
    %c0_i32_1 = arith.constant 0 : i32
    %c0_i32_2 = arith.constant 0 : i32
    return %c0_i32, %c0_i32_0, %c0_i32_1 : i32, i32, i32
  }
  func.func @transform_5(%arg0: i32) -> (i32, i32) {
    %c0_i32 = arith.constant 0 : i32
    %c0_i32_0 = arith.constant 0 : i32
    %c0_i32_1 = arith.constant 0 : i32
    return %c0_i32, %c0_i32_0 : i32, i32
  }
  func.func @transform_6(%arg0: i32) -> (i32, i32, i32) {
    %c0_i32 = arith.constant 0 : i32
    %c0_i32_0 = arith.constant 0 : i32
    %c0_i32_1 = arith.constant 0 : i32
    %c0_i32_2 = arith.constant 0 : i32
    return %c0_i32, %c0_i32_0, %c0_i32_1 : i32, i32, i32
  }
  func.func @transform_7(%arg0: i32) -> (i32, i32) {
    %c0_i32 = arith.constant 0 : i32
    %c0_i32_0 = arith.constant 0 : i32
    %c0_i32_1 = arith.constant 0 : i32
    return %c0_i32, %c0_i32_0 : i32, i32
  }
  func.func @transform_8(%arg0: i32) -> (i32, i32, i32) {
    %c0_i32 = arith.constant 0 : i32
    %c0_i32_0 = arith.constant 0 : i32
    %c0_i32_1 = arith.constant 0 : i32
    return %arg0, %c0_i32, %c0_i32_0 : i32, i32, i32
  }
}

</mosaic_0001>

<llo_original>
// kernel: tile.23
$region0: #{tile.23}
  #allocation0 [shape = 's32[1]{0}', space=sflag, size = 0x4, scoped, tag = 'scoped memory for tile.23']
  %s0 = inlined_call_operand.vmem [shape: f32[4], index: 0, kind: input, shape index: {}]
  %s1 = inlined_call_operand.vmem [shape: f32[32,4], index: 1, kind: output, shape index: {}]
  // Predicated region
  $region2: #{tile.23} parent=0 // pred_check
    _
  $region3: #{tile.23} parent=0 // pred_check_branch
    %3 = sbr.rel (0) target = $region5
  $region4: #{tile.23} parent=0 // pred_region
    _
  $region5: #{tile.23} parent=0 // pred_fallthru
    _
  %v4 = vld [vmem:[%s0] ss:$0 sm:$0xff]
  %5 = vst [vmem:[%s1] sm:$0xff] %v4
  %s6 = scalar_lea.vmem %s1, 8
  %7 = vst [vmem:[%s6] sm:$0xff] %v4
  %s8 = scalar_lea.vmem %s1, 16
  %9 = vst [vmem:[%s8] sm:$0xff] %v4
  %s10 = scalar_lea.vmem %s1, 24
  %11 = vst [vmem:[%s10] sm:$0xff] %v4

// kernel: tile.24
$region0: #{tile.24}
  %s0 = inlined_call_operand.vmem [shape: f32[32,4], index: 0, kind: input, shape index: {}]
  %s1 = inlined_call_operand.vmem [shape: f32[1,128], index: 1, kind: output, shape index: {}]
  $region1: #{tile.24} parent=0
    #allocation0 [shape = 'u8[4096]{0}', space=vmem, size = 0x1000, scoped, tag = 'scoped mem for output reshape']
    %v2 = vld [vmem:[%s0] sm:$0x1]
    %vm3 = vcmask 31744
    %4 = vst.msk [vmem:[#allocation0] sm:$0x1] %vm3, %v2
    %s5 = scalar_lea.vmem %s0, 31
    %v6 = vld [vmem:[%s5] sm:$0x1]
    %7 = vrot.lane.b32.xlu0 %v6, 124
    %v8 = vpop.permute.xlu0 %7
    %vm9 = vcmask 1048544
    %10 = vst.msk [vmem:[#allocation0] sm:$0x1] %vm9, %v8
    %s11 = scalar_lea.vmem %s0, 30
    %v12 = vld [vmem:[%s11] sm:$0x1]
    %13 = vrot.lane.b32.xlu0 %v12, 120
    %v14 = vpop.permute.xlu0 %13
    %vm15 = vcmask 1015744
    %16 = vst.msk [vmem:[#allocation0] sm:$0x1] %vm15, %v14
    %s17 = scalar_lea.vmem %s0, 29
    %v18 = vld [vmem:[%s17] sm:$0x1]
    %19 = vrot.lane.b32.xlu0 %v18, 116
    %v20 = vpop.permute.xlu0 %19
    %vm21 = vcmask 982944
    %22 = vst.msk [vmem:[#allocation0] sm:$0x1] %vm21, %v20
    %s23 = scalar_lea.vmem %s0, 28
    %v24 = vld [vmem:[%s23] sm:$0x1]
    %25 = vrot.lane.b32.xlu0 %v24, 112
    %v26 = vpop.permute.xlu0 %25
    %vm27 = vcmask 950144
    %28 = vst.msk [vmem:[#allocation0] sm:$0x1] %vm27, %v26
    %s29 = scalar_lea.vmem %s0, 27
    %v30 = vld [vmem:[%s29] sm:$0x1]
    %31 = vrot.lane.b32.xlu0 %v30, 108
    %v32 = vpop.permute.xlu0 %31
    %vm33 = vcmask 917344
    %34 = vst.msk [vmem:[#allocation0] sm:$0x1] %vm33, %v32
    %s35 = scalar_lea.vmem %s0, 26
    %v36 = vld [vmem:[%s35] sm:$0x1]
    %37 = vrot.lane.b32.xlu0 %v36, 104
    %v38 = vpop.permute.xlu0 %37
    %vm39 = vcmask 884544
    %40 = vst.msk [vmem:[#allocation0] sm:$0x1] %vm39, %v38
    %s41 = scalar_lea.vmem %s0, 25
    %v42 = vld [vmem:[%s41] sm:$0x1]
    %43 = vrot.lane.b32.xlu0 %v42, 100
    %v44 = vpop.permute.xlu0 %43
    %vm45 = vcmask 851744
    %46 = vst.msk [vmem:[#allocation0] sm:$0x1] %vm45, %v44
    %s47 = scalar_lea.vmem %s0, 24
    %v48 = vld [vmem:[%s47] sm:$0x1]
    %49 = vrot.lane.b32.xlu0 %v48, 96
    %v50 = vpop.permute.xlu0 %49
    %vm51 = vcmask 818944
    %52 = vst.msk [vmem:[#allocation0] sm:$0x1] %vm51, %v50
    %s53 = scalar_lea.vmem %s0, 23
    %v54 = vld [vmem:[%s53] sm:$0x1]
    %55 = vrot.lane.b32.xlu0 %v54, 92
    %v56 = vpop.permute.xlu0 %55
    %vm57 = vcmask 786144
    %58 = vst.msk [vmem:[#allocation0] sm:$0x1] %vm57, %v56
    %s59 = scalar_lea.vmem %s0, 22
    %v60 = vld [vmem:[%s59] sm:$0x1]
    %61 = vrot.lane.b32.xlu0 %v60, 88
    %v62 = vpop.permute.xlu0 %61
    %vm63 = vcmask 753344
    %64 = vst.msk [vmem:[#allocation0] sm:$0x1] %vm63, %v62
    %s65 = scalar_lea.vmem %s0, 21
    %v66 = vld [vmem:[%s65] sm:$0x1]
    %67 = vrot.lane.b32.xlu0 %v66, 84
    %v68 = vpop.permute.xlu0 %67
    %vm69 = vcmask 720544
    %70 = vst.msk [vmem:[#allocation0] sm:$0x1] %vm69, %v68
    %s71 = scalar_lea.vmem %s0, 20
    %v72 = vld [vmem:[%s71] sm:$0x1]
    %73 = vrot.lane.b32.xlu0 %v72, 80
    %v74 = vpop.permute.xlu0 %73
    %vm75 = vcmask 687744
    %76 = vst.msk [vmem:[#allocation0] sm:$0x1] %vm75, %v74
    %s77 = scalar_lea.vmem %s0, 19
    %v78 = vld [vmem:[%s77] sm:$0x1]
    %79 = vrot.lane.b32.xlu0 %v78, 76
    %v80 = vpop.permute.xlu0 %79
    %vm81 = vcmask 654944
    %82 = vst.msk [vmem:[#allocation0] sm:$0x1] %vm81, %v80
    %s83 = scalar_lea.vmem %s0, 18
    %v84 = vld [vmem:[%s83] sm:$0x1]
    %85 = vrot.lane.b32.xlu0 %v84, 72
    %v86 = vpop.permute.xlu0 %85
    %vm87 = vcmask 622144
    %88 = vst.msk [vmem:[#allocation0] sm:$0x1] %vm87, %v86
    %s89 = scalar_lea.vmem %s0, 17
    %v90 = vld [vmem:[%s89] sm:$0x1]
    %91 = vrot.lane.b32.xlu0 %v90, 68
    %v92 = vpop.permute.xlu0 %91
    %vm93 = vcmask 589344
    %94 = vst.msk [vmem:[#allocation0] sm:$0x1] %vm93, %v92
    %s95 = scalar_lea.vmem %s0, 16
    %v96 = vld [vmem:[%s95] sm:$0x1]
    %97 = vrot.lane.b32.xlu0 %v96, 64
    %v98 = vpop.permute.xlu0 %97
    %vm99 = vcmask 556544
    %100 = vst.msk [vmem:[#allocation0] sm:$0x1] %vm99, %v98
    %s101 = scalar_lea.vmem %s0, 15
    %v102 = vld [vmem:[%s101] sm:$0x1]
    %103 = vrot.lane.b32.xlu0 %v102, 60
    %v104 = vpop.permute.xlu0 %103
    %vm105 = vcmask 523744
    %106 = vst.msk [vmem:[#allocation0] sm:$0x1] %vm105, %v104
    %s107 = scalar_lea.vmem %s0, 14
    %v108 = vld [vmem:[%s107] sm:$0x1]
    %109 = vrot.lane.b32.xlu0 %v108, 56
    %v110 = vpop.permute.xlu0 %109
    %vm111 = vcmask 490944
    %112 = vst.msk [vmem:[#allocation0] sm:$0x1] %vm111, %v110
    %s113 = scalar_lea.vmem %s0, 13
    %v114 = vld [vmem:[%s113] sm:$0x1]
    %115 = vrot.lane.b32.xlu0 %v114, 52
    %v116 = vpop.permute.xlu0 %115
    %vm117 = vcmask 458144
    %118 = vst.msk [vmem:[#allocation0] sm:$0x1] %vm117, %v116
    %s119 = scalar_lea.vmem %s0, 12
    %v120 = vld [vmem:[%s119] sm:$0x1]
    %121 = vrot.lane.b32.xlu0 %v120, 48
    %v122 = vpop.permute.xlu0 %121
    %vm123 = vcmask 425344
    %124 = vst.msk [vmem:[#allocation0] sm:$0x1] %vm123, %v122
    %s125 = scalar_lea.vmem %s0, 11
    %v126 = vld [vmem:[%s125] sm:$0x1]
    %127 = vrot.lane.b32.xlu0 %v126, 44
    %v128 = vpop.permute.xlu0 %127
    %vm129 = vcmask 392544
    %130 = vst.msk [vmem:[#allocation0] sm:$0x1] %vm129, %v128
    %s131 = scalar_lea.vmem %s0, 10
    %v132 = vld [vmem:[%s131] sm:$0x1]
    %133 = vrot.lane.b32.xlu0 %v132, 40
    %v134 = vpop.permute.xlu0 %133
    %vm135 = vcmask 359744
    %136 = vst.msk [vmem:[#allocation0] sm:$0x1] %vm135, %v134
    %s137 = scalar_lea.vmem %s0, 9
    %v138 = vld [vmem:[%s137] sm:$0x1]
    %139 = vrot.lane.b32.xlu0 %v138, 36
    %v140 = vpop.permute.xlu0 %139
    %vm141 = vcmask 326944
    %142 = vst.msk [vmem:[#allocation0] sm:$0x1] %vm141, %v140
    %s143 = scalar_lea.vmem %s0, 8
    %v144 = vld [vmem:[%s143] sm:$0x1]
    %145 = vrot.lane.b32.xlu0 %v144, 32
    %v146 = vpop.permute.xlu0 %145
    %vm147 = vcmask 294144
    %148 = vst.msk [vmem:[#allocation0] sm:$0x1] %vm147, %v146
    %s149 = scalar_lea.vmem %s0, 7
    %v150 = vld [vmem:[%s149] sm:$0x1]
    %151 = vrot.lane.b32.xlu0 %v150, 28
    %v152 = vpop.permute.xlu0 %151
    %vm153 = vcmask 261344
    %154 = vst.msk [vmem:[#allocation0] sm:$0x1] %vm153, %v152
    %s155 = scalar_lea.vmem %s0, 6
    %v156 = vld [vmem:[%s155] sm:$0x1]
    %157 = vrot.lane.b32.xlu0 %v156, 24
    %v158 = vpop.permute.xlu0 %157
    %vm159 = vcmask 228544
    %160 = vst.msk [vmem:[#allocation0] sm:$0x1] %vm159, %v158
    %s161 = scalar_lea.vmem %s0, 5
    %v162 = vld [vmem:[%s161] sm:$0x1]
    %163 = vrot.lane.b32.xlu0 %v162, 20
    %v164 = vpop.permute.xlu0 %163
    %vm165 = vcmask 195744
    %166 = vst.msk [vmem:[#allocation0] sm:$0x1] %vm165, %v164
    %s167 = scalar_lea.vmem %s0, 4
    %v168 = vld [vmem:[%s167] sm:$0x1]
    %169 = vrot.lane.b32.xlu0 %v168, 16
    %v170 = vpop.permute.xlu0 %169
    %vm171 = vcmask 162944
    %172 = vst.msk [vmem:[#allocation0] sm:$0x1] %vm171, %v170
    %s173 = scalar_lea.vmem %s0, 3
    %v174 = vld [vmem:[%s173] sm:$0x1]
    %175 = vrot.lane.b32.xlu0 %v174, 12
    %v176 = vpop.permute.xlu0 %175
    %vm177 = vcmask 130144
    %178 = vst.msk [vmem:[#allocation0] sm:$0x1] %vm177, %v176
    %s179 = scalar_lea.vmem %s0, 2
    %v180 = vld [vmem:[%s179] sm:$0x1]
    %181 = vrot.lane.b32.xlu0 %v180, 8
    %v182 = vpop.permute.xlu0 %181
    %vm183 = vcmask 97344
    %184 = vst.msk [vmem:[#allocation0] sm:$0x1] %vm183, %v182
    %s185 = scalar_lea.vmem %s0, 1
    %v186 = vld [vmem:[%s185] sm:$0x1]
    %187 = vrot.lane.b32.xlu0 %v186, 4
    %v188 = vpop.permute.xlu0 %187
    %vm189 = vcmask 64544
    %190 = vst.msk [vmem:[#allocation0] sm:$0x1] %vm189, %v188
    %s192 = sshll.u32 1, 1
    %s193 = ssub.s32 %s192, 1
    %v195 = vld [vmem:[#allocation0] sm:%s193]
    %s196 = sshll.u32 1, 1
    %s197 = ssub.s32 %s196, 1
    %198 = vst [vmem:[%s1] sm:%s197] %v195

// kernel: decoder_forward.1
$region0: #{decoder_forward.1}
  #allocation0 [shape = 'u32[]', space=smem, size = 0x4, offset = 0x4, fixed_abs, tag = 'smem constant byte address 0x4 - core index']
  #allocation1 [shape = 'u32[144,128]{1,0:T(1,128)}', space=vmem, size = 0x12000, scoped, tag = 'internal scratch']
  #allocation2 [shape = 'f32[10,256]{1,0:T(8,128)}', space=vmem, size = 0x4000, scoped, tag = 'scratch operand']
  #allocation3 [shape = 'f32[10,128]{1,0:T(8,128)}', space=vmem, size = 0x2000, scoped, tag = 'scratch operand']
  %s0 = inlined_call_operand.vmem [shape: f32[2,8,128], index: 0, kind: input, shape index: {}]
  %s1 = inlined_call_operand.vmem [shape: f32[2,8,64], index: 1, kind: input, shape index: {}]
  %s2 = inlined_call_operand.vmem [shape: f32[64,128], index: 2, kind: input, shape index: {}]
  %s3 = inlined_call_operand.vmem [shape: f32[1,128], index: 3, kind: input, shape index: {}]
  %s4 = inlined_call_operand.vmem [shape: f32[3,256,128], index: 4, kind: input, shape index: {}]
  %s5 = inlined_call_operand.vmem [shape: f32[1,128], index: 5, kind: input, shape index: {}]
  %s6 = inlined_call_operand.vmem [shape: f32[3,128,128], index: 6, kind: input, shape index: {}]
  %s7 = inlined_call_operand.vmem [shape: f32[1,128], index: 7, kind: input, shape index: {}]
  %s8 = inlined_call_operand.vmem [shape: f32[2,8,128], index: 8, kind: output, shape index: {}]
  %s9 = sld [smem:[#allocation0]]
  $region65: #{decoder_forward.1} parent=0
    _
  %s11 = ssub.s32 1, %s9
  %s12 = scalar_select 0, %s11, %s9
  loop: start=0, step=1, limit=4
  $region2: #{decoder_forward.1} parent=0 // loop_pre_header
    _
  $region3: #{decoder_forward.1} parent=0 // loop_header
    %s14 = sphi 0, %s18
    %p15 = scmp.ge.s32.totalorder %s14, 4
    %s24 = sphi 0, %s26
    %s27 = sphi 0, %s24
    %s28 = sphi 0, %s27
    %s44 = sphi 0, %s28
    %s50 = sphi 0, %s52
    %s53 = sphi 0, %s50
    %s54 = sphi 0, %s53
    %s70 = sphi 0, %s54
    %s74 = sphi 0, %s74
    %s76 = sphi 0, %s74
    %s77 = sphi 0, %s76
    %s91 = sphi 0, %s77
    %s95 = sphi 0, %s95
    %s97 = sphi 0, %s95
    %s98 = sphi 0, %s97
    %s112 = sphi 0, %s98
    %s116 = sphi 0, %s116
    %s118 = sphi 0, %s116
    %s119 = sphi 0, %s118
    %s133 = sphi 0, %s119
    %s137 = sphi 0, %s137
    %s139 = sphi 0, %s137
    %s140 = sphi 0, %s139
    %s154 = sphi 0, %s140
    %s158 = sphi 0, %s158
    %s160 = sphi 0, %s158
    %s161 = sphi 0, %s160
    %s175 = sphi 0, %s161
    %s179 = sphi 0, %s179
    %s181 = sphi 0, %s179
    %s182 = sphi 0, %s181
    %s196 = sphi 0, %s182
    %s202 = sphi 0, %s204
    %s205 = sphi 0, %s202
    %s206 = sphi 0, %s205
    %s222 = sphi 0, %s206
  $region4: #{decoder_forward.1} parent=0 // loop_header_branch
    %17 = sbr.rel (%p15) target = $region8
  $region5: #{decoder_forward.1} parent=0 // loop_body
    %s19 = ssub.s32 %s14, 1
    %s20 = ssub.s32 %s14, 2
    %s21 = sadd.s32 %s14, 1
    %s22 = ssub.s32 %s14, %s21
    %p23 = scmp.eq.s32.totalorder %s22, 0
    %s25 = sadd.s32 %s24, 1
    %s26 = scalar_select %p23, %s24, %s25
    %p29 = pneg %p23
    %p30 = scmp.eq.s32.totalorder %s14, 1
    %p31 = por %p29, %p30
    %p32 = scmp.ne.s32.totalorder %s24, %s27
    %p33 = scmp.eq.s32.totalorder %s14, 0
    %p34 = por %p32, %p33
    %p35 = scmp.ne.s32.totalorder %s24, %s27
    %p36 = scmp.eq.s32.totalorder %s19, 1
    %p37 = por %p35, %p36
    %p38 = scmp.ne.s32.totalorder %s27, %s28
    %p39 = scmp.eq.s32.totalorder %s19, 0
    %p40 = por %p38, %p39
    %p41 = scmp.ne.s32.totalorder %s27, %s28
    %p42 = scmp.eq.s32.totalorder %s20, 1
    %p43 = por %p41, %p42
    %p45 = scmp.ne.s32.totalorder %s28, %s44
    %p46 = scmp.eq.s32.totalorder %s20, 0
    %p47 = por %p45, %p46
    %s48 = ssub.s32 %s14, %s21
    %p49 = scmp.eq.s32.totalorder %s48, 0
    %s51 = sadd.s32 %s50, 1
    %s52 = scalar_select %p49, %s50, %s51
    %p55 = pneg %p49
    %p56 = scmp.eq.s32.totalorder %s14, 1
    %p57 = por %p55, %p56
    %p58 = scmp.ne.s32.totalorder %s50, %s53
    %p59 = scmp.eq.s32.totalorder %s14, 0
    %p60 = por %p58, %p59
    %p61 = scmp.ne.s32.totalorder %s50, %s53
    %p62 = scmp.eq.s32.totalorder %s19, 1
    %p63 = por %p61, %p62
    %p64 = scmp.ne.s32.totalorder %s53, %s54
    %p65 = scmp.eq.s32.totalorder %s19, 0
    %p66 = por %p64, %p65
    %p67 = scmp.ne.s32.totalorder %s53, %s54
    %p68 = scmp.eq.s32.totalorder %s20, 1
    %p69 = por %p67, %p68
    %p71 = scmp.ne.s32.totalorder %s54, %s70
    %p72 = scmp.eq.s32.totalorder %s20, 0
    %p73 = por %p71, %p72
    %s75 = sadd.s32 %s74, 1
    %p78 = scmp.eq.s32.totalorder %s14, 1
    %p79 = scmp.ne.s32.totalorder %s74, %s76
    %p80 = scmp.eq.s32.totalorder %s14, 0
    %p81 = por %p79, %p80
    %p82 = scmp.ne.s32.totalorder %s74, %s76
    %p83 = scmp.eq.s32.totalorder %s19, 1
    %p84 = por %p82, %p83
    %p85 = scmp.ne.s32.totalorder %s76, %s77
    %p86 = scmp.eq.s32.totalorder %s19, 0
    %p87 = por %p85, %p86
    %p88 = scmp.ne.s32.totalorder %s76, %s77
    %p89 = scmp.eq.s32.totalorder %s20, 1
    %p90 = por %p88, %p89
    %p92 = scmp.ne.s32.totalorder %s77, %s91
    %p93 = scmp.eq.s32.totalorder %s20, 0
    %p94 = por %p92, %p93
    %s96 = sadd.s32 %s95, 1
    %p99 = scmp.eq.s32.totalorder %s14, 1
    %p100 = scmp.ne.s32.totalorder %s95, %s97
    %p101 = scmp.eq.s32.totalorder %s14, 0
    %p102 = por %p100, %p101
    %p103 = scmp.ne.s32.totalorder %s95, %s97
    %p104 = scmp.eq.s32.totalorder %s19, 1
    %p105 = por %p103, %p104
    %p106 = scmp.ne.s32.totalorder %s97, %s98
    %p107 = scmp.eq.s32.totalorder %s19, 0
    %p108 = por %p106, %p107
    %p109 = scmp.ne.s32.totalorder %s97, %s98
    %p110 = scmp.eq.s32.totalorder %s20, 1
    %p111 = por %p109, %p110
    %p113 = scmp.ne.s32.totalorder %s98, %s112
    %p114 = scmp.eq.s32.totalorder %s20, 0
    %p115 = por %p113, %p114
    %s117 = sadd.s32 %s116, 1
    %p120 = scmp.eq.s32.totalorder %s14, 1
    %p121 = scmp.ne.s32.totalorder %s116, %s118
    %p122 = scmp.eq.s32.totalorder %s14, 0
    %p123 = por %p121, %p122
    %p124 = scmp.ne.s32.totalorder %s116, %s118
    %p125 = scmp.eq.s32.totalorder %s19, 1
    %p126 = por %p124, %p125
    %p127 = scmp.ne.s32.totalorder %s118, %s119
    %p128 = scmp.eq.s32.totalorder %s19, 0
    %p129 = por %p127, %p128
    %p130 = scmp.ne.s32.totalorder %s118, %s119
    %p131 = scmp.eq.s32.totalorder %s20, 1
    %p132 = por %p130, %p131
    %p134 = scmp.ne.s32.totalorder %s119, %s133
    %p135 = scmp.eq.s32.totalorder %s20, 0
    %p136 = por %p134, %p135
    %s138 = sadd.s32 %s137, 1
    %p141 = scmp.eq.s32.totalorder %s14, 1
    %p142 = scmp.ne.s32.totalorder %s137, %s139
    %p143 = scmp.eq.s32.totalorder %s14, 0
    %p144 = por %p142, %p143
    %p145 = scmp.ne.s32.totalorder %s137, %s139
    %p146 = scmp.eq.s32.totalorder %s19, 1
    %p147 = por %p145, %p146
    %p148 = scmp.ne.s32.totalorder %s139, %s140
    %p149 = scmp.eq.s32.totalorder %s19, 0
    %p150 = por %p148, %p149
    %p151 = scmp.ne.s32.totalorder %s139, %s140
    %p152 = scmp.eq.s32.totalorder %s20, 1
    %p153 = por %p151, %p152
    %p155 = scmp.ne.s32.totalorder %s140, %s154
    %p156 = scmp.eq.s32.totalorder %s20, 0
    %p157 = por %p155, %p156
    %s159 = sadd.s32 %s158, 1
    %p162 = scmp.eq.s32.totalorder %s14, 1
    %p163 = scmp.ne.s32.totalorder %s158, %s160
    %p164 = scmp.eq.s32.totalorder %s14, 0
    %p165 = por %p163, %p164
    %p166 = scmp.ne.s32.totalorder %s158, %s160
    %p167 = scmp.eq.s32.totalorder %s19, 1
    %p168 = por %p166, %p167
    %p169 = scmp.ne.s32.totalorder %s160, %s161
    %p170 = scmp.eq.s32.totalorder %s19, 0
    %p171 = por %p169, %p170
    %p172 = scmp.ne.s32.totalorder %s160, %s161
    %p173 = scmp.eq.s32.totalorder %s20, 1
    %p174 = por %p172, %p173
    %p176 = scmp.ne.s32.totalorder %s161, %s175
    %p177 = scmp.eq.s32.totalorder %s20, 0
    %p178 = por %p176, %p177
    %s180 = sadd.s32 %s179, 1
    %p183 = scmp.eq.s32.totalorder %s14, 1
    %p184 = scmp.ne.s32.totalorder %s179, %s181
    %p185 = scmp.eq.s32.totalorder %s14, 0
    %p186 = por %p184, %p185
    %p187 = scmp.ne.s32.totalorder %s179, %s181
    %p188 = scmp.eq.s32.totalorder %s19, 1
    %p189 = por %p187, %p188
    %p190 = scmp.ne.s32.totalorder %s181, %s182
    %p191 = scmp.eq.s32.totalorder %s19, 0
    %p192 = por %p190, %p191
    %p193 = scmp.ne.s32.totalorder %s181, %s182
    %p194 = scmp.eq.s32.totalorder %s20, 1
    %p195 = por %p193, %p194
    %p197 = scmp.ne.s32.totalorder %s182, %s196
    %p198 = scmp.eq.s32.totalorder %s20, 0
    %p199 = por %p197, %p198
    %s200 = ssub.s32 %s14, %s21
    %p201 = scmp.eq.s32.totalorder %s200, 0
    %s203 = sadd.s32 %s202, 1
    %s204 = scalar_select %p201, %s202, %s203
    %p207 = pneg %p201
    %p208 = scmp.eq.s32.totalorder %s14, 1
    %p209 = por %p207, %p208
    %p210 = scmp.ne.s32.totalorder %s202, %s205
    %p211 = scmp.eq.s32.totalorder %s14, 0
    %p212 = por %p210, %p211
    %p213 = scmp.ne.s32.totalorder %s202, %s205
    %p214 = scmp.eq.s32.totalorder %s19, 1
    %p215 = por %p213, %p214
    %p216 = scmp.ne.s32.totalorder %s205, %s206
    %p217 = scmp.eq.s32.totalorder %s19, 0
    %p218 = por %p216, %p217
    %p219 = scmp.ne.s32.totalorder %s205, %s206
    %p220 = scmp.eq.s32.totalorder %s20, 1
    %p221 = por %p219, %p220
    %p223 = scmp.ne.s32.totalorder %s206, %s222
    %p224 = scmp.eq.s32.totalorder %s20, 0
    %p225 = por %p223, %p224
    %p226 = scmp.le.s32.totalorder 1, %s14
    %p227 = scmp.lt.s32.totalorder %s14, 3
    %p228 = pnand %p226, %p227
    %p229 = pneg %p228
    // Predicated region
    $region9: #{decoder_forward.1} parent=5 // pred_check
      _
    $region10: #{decoder_forward.1} parent=5 // pred_check_branch
      %231 = sbr.rel (%p228) target = $region12
    $region11: #{decoder_forward.1} parent=5 // pred_region
      %s232 = ssub.s32 %s14, 1
      // Predicated region
      $region13: #{decoder_forward.1} parent=11 // pred_check
        %p233 = pneg %p87
      $region14: #{decoder_forward.1} parent=11 // pred_check_branch
        %235 = sbr.rel (%p233) target = $region16
      $region15: #{decoder_forward.1} parent=11 // pred_region
        _
      $region16: #{decoder_forward.1} parent=11 // pred_fallthru
        _
      // Predicated region
      $region17: #{decoder_forward.1} parent=11 // pred_check
        %p236 = pneg %p108
      $region18: #{decoder_forward.1} parent=11 // pred_check_branch
        %238 = sbr.rel (%p236) target = $region20
      $region19: #{decoder_forward.1} parent=11 // pred_region
        _
      $region20: #{decoder_forward.1} parent=11 // pred_fallthru
        _
      // Predicated region
      $region21: #{decoder_forward.1} parent=11 // pred_check
        %p239 = pneg %p129
      $region22: #{decoder_forward.1} parent=11 // pred_check_branch
        %241 = sbr.rel (%p239) target = $region24
      $region23: #{decoder_forward.1} parent=11 // pred_region
        _
      $region24: #{decoder_forward.1} parent=11 // pred_fallthru
        _
      // Predicated region
      $region25: #{decoder_forward.1} parent=11 // pred_check
        %p242 = pneg %p150
      $region26: #{decoder_forward.1} parent=11 // pred_check_branch
        %244 = sbr.rel (%p242) target = $region28
      $region27: #{decoder_forward.1} parent=11 // pred_region
        _
      $region28: #{decoder_forward.1} parent=11 // pred_fallthru
        _
      // Predicated region
      $region29: #{decoder_forward.1} parent=11 // pred_check
        %p245 = pneg %p171
      $region30: #{decoder_forward.1} parent=11 // pred_check_branch
        %247 = sbr.rel (%p245) target = $region32
      $region31: #{decoder_forward.1} parent=11 // pred_region
        _
      $region32: #{decoder_forward.1} parent=11 // pred_fallthru
        _
      // Predicated region
      $region33: #{decoder_forward.1} parent=11 // pred_check
        %p248 = pneg %p192
      $region34: #{decoder_forward.1} parent=11 // pred_check_branch
        %250 = sbr.rel (%p248) target = $region36
      $region35: #{decoder_forward.1} parent=11 // pred_region
        _
      $region36: #{decoder_forward.1} parent=11 // pred_fallthru
        _
    $region12: #{decoder_forward.1} parent=5 // pred_fallthru
      _
    %p251 = scmp.lt.s32.totalorder %s14, 2
    // Predicated region
    $region37: #{decoder_forward.1} parent=5 // pred_check
      %p252 = pneg %p251
    $region38: #{decoder_forward.1} parent=5 // pred_check_branch
      %254 = sbr.rel (%p252) target = $region40
    $region39: #{decoder_forward.1} parent=5 // pred_region
      // Predicated region
      $region41: #{decoder_forward.1} parent=39 // pred_check
        %p255 = pneg %p34
      $region42: #{decoder_forward.1} parent=39 // pred_check_branch
        %257 = sbr.rel (%p255) target = $region44
      $region43: #{decoder_forward.1} parent=39 // pred_region
        %p258 = scmp.lt.s32.totalorder %s14, 1
        %s259 = scalar_select %p258, %s14, 1
        %s260 = smul.addr %s259, 8
        %s261 = scalar_lea.vmem %s0, %s260
      $region44: #{decoder_forward.1} parent=39 // pred_fallthru
        _
      // Predicated region
      $region45: #{decoder_forward.1} parent=39 // pred_check
        %p262 = pneg %p60
      $region46: #{decoder_forward.1} parent=39 // pred_check_branch
        %264 = sbr.rel (%p262) target = $region48
      $region47: #{decoder_forward.1} parent=39 // pred_region
        %p265 = scmp.lt.s32.totalorder %s14, 1
        %s266 = scalar_select %p265, %s14, 1
        %s267 = smul.addr %s266, 8
        %s268 = scalar_lea.vmem %s1, %s267
      $region48: #{decoder_forward.1} parent=39 // pred_fallthru
        _
    $region40: #{decoder_forward.1} parent=5 // pred_fallthru
      _
    %p269 = scmp.le.s32.totalorder 1, %s14
    %p270 = scmp.lt.s32.totalorder %s14, 3
    %p271 = pnand %p269, %p270
    %p272 = pneg %p271
    // Predicated region
    $region49: #{decoder_forward.1} parent=5 // pred_check
      _
    $region50: #{decoder_forward.1} parent=5 // pred_check_branch
      %274 = sbr.rel (%p271) target = $region52
    $region51: #{decoder_forward.1} parent=5 // pred_region
      %s275 = ssub.s32 %s14, 1
      %p276 = scmp.lt.s32.totalorder %s19, 1
      %s277 = scalar_select %p276, %s19, 1
      %s278 = smul.addr %s277, 8
      %s279 = scalar_lea.vmem %s0, %s278
      %p280 = pneg %p40
      %p281 = pneg %p37
      %p282 = scmp.lt.s32.totalorder %s19, 1
      %s283 = scalar_select %p282, %s19, 1
      %s284 = smul.addr %s283, 8
      %s285 = scalar_lea.vmem %s1, %s284
      %p286 = pneg %p66
      %p287 = pneg %p63
      %p288 = pneg %p87
      %p289 = pneg %p84
      %p290 = pneg %p108
      %p291 = pneg %p105
      %p292 = pneg %p129
      %p293 = pneg %p126
      %p294 = pneg %p150
      %p295 = pneg %p147
      %p296 = pneg %p171
      %p297 = pneg %p168
      %p298 = pneg %p192
      %p299 = pneg %p189
      %p300 = pneg %p218
      %p301 = pneg %p215
      %p302 = scmp.lt.s32.totalorder %s19, 1
      %s303 = scalar_select %p302, %s19, 1
      %s304 = smul.addr %s303, 8
      %s305 = scalar_lea.vmem %s8, %s304
      %p306 = scmp.lt.s32.totalorder %s19, 1
      %s307 = scalar_select %p306, %s19, 1
      %s308 = smul.addr %s307, 8
      %s309 = scalar_lea.vmem %s0, %s308
      %p310 = scmp.lt.s32.totalorder %s19, 1
      %s311 = scalar_select %p310, %s19, 1
      %s312 = smul.addr %s311, 8
      %s313 = scalar_lea.vmem %s1, %s312
      %p314 = scmp.lt.s32.totalorder %s19, 1
      %s315 = scalar_select %p314, %s19, 1
      %s316 = smul.addr %s315, 8
      %s317 = scalar_lea.vmem %s8, %s316
      %v318 = vlaneseq
      %vm319 = vcmp.ge.s32.totalorder %v318, 0
      %vm320 = vcmp.lt.s32.totalorder %v318, 256
      %vm321 = vmand %vm319, %vm320
      %322 = vst.msk [vmem:[#allocation2] ss:$8 sm:$0x3] %vm321, 0.0
      %323 = vst.msk [vmem:[#allocation2] ss:$8 sm:$0x0] %vm321, 0.0
      %s324 = scalar_lea.vmem [#allocation2], 17
      %325 = vst.msk [vmem:[%s324] ss:$8 sm:$0x3] %vm321, 0.0
      %326 = vst.msk [vmem:[%s324] ss:$8 sm:$0x0] %vm321, 0.0
      %327 = vst [vmem:[#allocation3] sm:$0x1] 0.0
      %328 = vst [vmem:[#allocation3 + $0x9] sm:$0x1] 0.0
      %v329 = vld [vmem:[%s309] sm:$0xff]
      %v331 = vrot.slane %v329, 7
      %333 = vst [vmem:[#allocation2] sm:$0xfe] %v331
      %334 = vst [vmem:[#allocation2 + $0x10] sm:$0x1] %v331
      %v335 = vld [vmem:[%s313] sm:$0xff]
      %v336 = vld [vmem:[%s2] sm:$0xff]
      %v337 = vld [vmem:[%s2 + $0x8] sm:$0xff]
      %v338 = vld [vmem:[%s2 + $0x10] sm:$0xff]
      %v339 = vld [vmem:[%s2 + $0x18] sm:$0xff]
      %v340 = vld [vmem:[%s2 + $0x20] sm:$0xff]
      %v341 = vld [vmem:[%s2 + $0x28] sm:$0xff]
      %v342 = vld [vmem:[%s2 + $0x30] sm:$0xff]
      %v343 = vld [vmem:[%s2 + $0x38] sm:$0xff]
      %v344 = vld [vmem:[%s3] sm:$0x1]
      %v346 = vlaneseq
      %v347 = vshrl.u32 %v346, 7
      %v348 = vsub.s32 0, %v347
      %v349 = vrot.slane %v344, %v348
      %vm351 = vcmask 523264
      %v353 = vsel %vm351, %v335, 0
      %355 = vmatprep.subr.mxu0 0.0
      %356 = vmatpush1.msra.mxu0 0.0
      %357 = vmatprep.subr.mxu0 0.0
      %358 = vmatpush1.msra.mxu0 0.0
      %359 = vmatprep.subr.mxu0 0.0
      %360 = vmatpush1.msra.mxu0 0.0
      %361 = vmatprep.subr.mxu0 0.0
      %362 = vmatpush1.msra.mxu0 0.0
      %363 = vmatprep.subr.mxu0 0.0
      %364 = vmatpush1.msra.mxu0 0.0
      %365 = vmatprep.subr.mxu0 0.0
      %366 = vmatpush1.msra.mxu0 0.0
      %367 = vmatprep.subr.mxu0 0.0
      %368 = vmatpush1.msra.mxu0 0.0
      %369 = vmatprep.subr.mxu0 0.0
      %370 = vmatpush1.msra.mxu0 0.0
      %371 = vmatprep.subr.mxu0 0.0
      %372 = vmatpush1.msra.mxu0 %v343
      %373 = vmatprep.subr.mxu0 0.0
      %374 = vmatpush1.msra.mxu0 %v342
      %375 = vmatprep.subr.mxu0 0.0
      %376 = vmatpush1.msra.mxu0 %v341
      %377 = vmatprep.subr.mxu0 0.0
      %378 = vmatpush1.msra.mxu0 %v340
      %379 = vmatprep.subr.mxu0 0.0
      %380 = vmatpush1.msra.mxu0 %v339
      %381 = vmatprep.subr.mxu0 0.0
      %382 = vmatpush1.msra.mxu0 %v338
      %383 = vmatprep.subr.mxu0 0.0
      %384 = vmatpush1.msra.mxu0 %v337
      %385 = vmatprep.subr.mxu0 0.0
      %386 = vmatpush1.msra.mxu0 %v336
      %387 = vmatprep.subr.mxu0 0.0
      %388 = vmatpush2.msra.mxu0 0.0
      %389 = vmatprep.subr.mxu0 0.0
      %390 = vmatpush2.msra.mxu0 0.0
      %391 = vmatprep.subr.mxu0 0.0
      %392 = vmatpush2.msra.mxu0 0.0
      %393 = vmatprep.subr.mxu0 0.0
      %394 = vmatpush2.msra.mxu0 0.0
      %395 = vmatprep.subr.mxu0 0.0
      %396 = vmatpush2.msra.mxu0 0.0
      %397 = vmatprep.subr.mxu0 0.0
      %398 = vmatpush2.msra.mxu0 0.0
      %399 = vmatprep.subr.mxu0 0.0
      %400 = vmatpush2.msra.mxu0 0.0
      %401 = vmatprep.subr.mxu0 0.0
      %402 = vmatpush2.msra.mxu0 0.0
      %403 = vmatprep.subr.mxu0 0.0
      %404 = vmatpush2.msra.mxu0 0.0
      %405 = vmatprep.subr.mxu0 0.0
      %406 = vmatpush2.msra.mxu0 0.0
      %407 = vmatprep.subr.mxu0 0.0
      %408 = vmatpush2.msra.mxu0 0.0
      %409 = vmatprep.subr.mxu0 0.0
      %410 = vmatpush2.msra.mxu0 0.0
      %411 = vmatprep.subr.mxu0 0.0
      %412 = vmatpush2.msra.mxu0 0.0
      %413 = vmatprep.subr.mxu0 0.0
      %414 = vmatpush2.msra.mxu0 0.0
      %415 = vmatprep.subr.mxu0 0.0
      %416 = vmatpush2.msra.mxu0 0.0
      %417 = vmatprep.subr.mxu0 0.0
      %418 = vmatpush2.msra.mxu0 0.0
      %419 = vmatprep.mubr.f32.mxu0 0.0
      %420 = vmatmul.mubr.f32.gmra.mxu0 %v353
      %v421 = vpop.f32.mrf.mxu0
      %v422 = vadd.f32 %v349, %v421
      %v423 = vpop.f32.mrf.mxu0
      %424 = vdwg.mxu0
      %v426 = vrot.slane %v422, 7
      %428 = vst [vmem:[#allocation2 + $0x8] sm:$0xfe] %v426
      %429 = vst [vmem:[#allocation2 + $0x18] sm:$0x1] %v426
      %v430 = vld [vmem:[#allocation2] sm:$0xff]
      %v431 = vld [vmem:[#allocation2 + $0x8] sm:$0xff]
      %v432 = vld [vmem:[%s4] sm:$0xff]
      %v433 = vld [vmem:[%s4 + $0x8] sm:$0xff]
      %v434 = vld [vmem:[%s4 + $0x10] sm:$0xff]
      %v435 = vld [vmem:[%s4 + $0x18] sm:$0xff]
      %v436 = vld [vmem:[%s4 + $0x20] sm:$0xff]
      %v437 = vld [vmem:[%s4 + $0x28] sm:$0xff]
      %v438 = vld [vmem:[%s4 + $0x30] sm:$0xff]
      %v439 = vld [vmem:[%s4 + $0x38] sm:$0xff]
      %v440 = vld [vmem:[%s4 + $0x40] sm:$0xff]
      %v441 = vld [vmem:[%s4 + $0x48] sm:$0xff]
      %v442 = vld [vmem:[%s4 + $0x50] sm:$0xff]
      %v443 = vld [vmem:[%s4 + $0x58] sm:$0xff]
      %v444 = vld [vmem:[%s4 + $0x60] sm:$0xff]
      %v445 = vld [vmem:[%s4 + $0x68] sm:$0xff]
      %v446 = vld [vmem:[%s4 + $0x70] sm:$0xff]
      %v447 = vld [vmem:[%s4 + $0x78] sm:$0xff]
      %v448 = vld [vmem:[%s4 + $0x80] sm:$0xff]
      %v449 = vld [vmem:[%s4 + $0x88] sm:$0xff]
      %v450 = vld [vmem:[%s4 + $0x90] sm:$0xff]
      %v451 = vld [vmem:[%s4 + $0x98] sm:$0xff]
      %v452 = vld [vmem:[%s4 + $0xa0] sm:$0xff]
      %v453 = vld [vmem:[%s4 + $0xa8] sm:$0xff]
      %v454 = vld [vmem:[%s4 + $0xb0] sm:$0xff]
      %v455 = vld [vmem:[%s4 + $0xb8] sm:$0xff]
      %v456 = vld [vmem:[%s4 + $0xc0] sm:$0xff]
      %v457 = vld [vmem:[%s4 + $0xc8] sm:$0xff]
      %v458 = vld [vmem:[%s4 + $0xd0] sm:$0xff]
      %v459 = vld [vmem:[%s4 + $0xd8] sm:$0xff]
      %v460 = vld [vmem:[%s4 + $0xe0] sm:$0xff]
      %v461 = vld [vmem:[%s4 + $0xe8] sm:$0xff]
      %v462 = vld [vmem:[%s4 + $0xf0] sm:$0xff]
      %v463 = vld [vmem:[%s4 + $0xf8] sm:$0xff]
      %v464 = vld [vmem:[#allocation2] sm:$0xfe]
      %v465 = vld [vmem:[#allocation2 + $0x8] sm:$0xfe]
      %v466 = vld [vmem:[#allocation2 + $0x10] sm:$0x1]
      %v467 = vld [vmem:[#allocation2 + $0x18] sm:$0x1]
      %s468 = scalar_lea.vmem %s4, 256
      %v469 = vld [vmem:[%s468] sm:$0xff]
      %v470 = vld [vmem:[%s468 + $0x8] sm:$0xff]
      %v471 = vld [vmem:[%s468 + $0x10] sm:$0xff]
      %v472 = vld [vmem:[%s468 + $0x18] sm:$0xff]
      %v473 = vld [vmem:[%s468 + $0x20] sm:$0xff]
      %v474 = vld [vmem:[%s468 + $0x28] sm:$0xff]
      %v475 = vld [vmem:[%s468 + $0x30] sm:$0xff]
      %v476 = vld [vmem:[%s468 + $0x38] sm:$0xff]
      %v477 = vld [vmem:[%s468 + $0x40] sm:$0xff]
      %v478 = vld [vmem:[%s468 + $0x48] sm:$0xff]
      %v479 = vld [vmem:[%s468 + $0x50] sm:$0xff]
      %v480 = vld [vmem:[%s468 + $0x58] sm:$0xff]
      %v481 = vld [vmem:[%s468 + $0x60] sm:$0xff]
      %v482 = vld [vmem:[%s468 + $0x68] sm:$0xff]
      %v483 = vld [vmem:[%s468 + $0x70] sm:$0xff]
      %v484 = vld [vmem:[%s468 + $0x78] sm:$0xff]
      %v485 = vld [vmem:[%s468 + $0x80] sm:$0xff]
      %v486 = vld [vmem:[%s468 + $0x88] sm:$0xff]
      %v487 = vld [vmem:[%s468 + $0x90] sm:$0xff]
      %v488 = vld [vmem:[%s468 + $0x98] sm:$0xff]
      %v489 = vld [vmem:[%s468 + $0xa0] sm:$0xff]
      %v490 = vld [vmem:[%s468 + $0xa8] sm:$0xff]
      %v491 = vld [vmem:[%s468 + $0xb0] sm:$0xff]
      %v492 = vld [vmem:[%s468 + $0xb8] sm:$0xff]
      %v493 = vld [vmem:[%s468 + $0xc0] sm:$0xff]
      %v494 = vld [vmem:[%s468 + $0xc8] sm:$0xff]
      %v495 = vld [vmem:[%s468 + $0xd0] sm:$0xff]
      %v496 = vld [vmem:[%s468 + $0xd8] sm:$0xff]
      %v497 = vld [vmem:[%s468 + $0xe0] sm:$0xff]
      %v498 = vld [vmem:[%s468 + $0xe8] sm:$0xff]
      %v499 = vld [vmem:[%s468 + $0xf0] sm:$0xff]
      %v500 = vld [vmem:[%s468 + $0xf8] sm:$0xff]
      %vm505 = vcmask 1046528
      %v506 = vrot.slane %v464, 1
      %v507 = vrot.slane %v466, 1
      %v508 = vsel %vm505, %v506, %v507
      %v509 = vrot.slane %v465, 1
      %v510 = vrot.slane %v467, 1
      %v511 = vsel %vm505, %v509, %v510
      %514 = vmatprep.subr.mxu0 0.0
      %515 = vmatpush1.msra.mxu0 %v484
      %516 = vmatprep.subr.mxu0 0.0
      %517 = vmatpush1.msra.mxu0 %v483
      %518 = vmatprep.subr.mxu0 0.0
      %519 = vmatpush1.msra.mxu0 %v482
      %520 = vmatprep.subr.mxu0 0.0
      %521 = vmatpush1.msra.mxu0 %v481
      %522 = vmatprep.subr.mxu0 0.0
      %523 = vmatpush1.msra.mxu0 %v480
      %524 = vmatprep.subr.mxu0 0.0
      %525 = vmatpush1.msra.mxu0 %v479
      %526 = vmatprep.subr.mxu0 0.0
      %527 = vmatpush1.msra.mxu0 %v478
      %528 = vmatprep.subr.mxu0 0.0
      %529 = vmatpush1.msra.mxu0 %v477
      %530 = vmatprep.subr.mxu0 0.0
      %531 = vmatpush1.msra.mxu0 %v476
      %532 = vmatprep.subr.mxu0 0.0
      %533 = vmatpush1.msra.mxu0 %v475
      %534 = vmatprep.subr.mxu0 0.0
      %535 = vmatpush1.msra.mxu0 %v474
      %536 = vmatprep.subr.mxu0 0.0
      %537 = vmatpush1.msra.mxu0 %v473
      %538 = vmatprep.subr.mxu0 0.0
      %539 = vmatpush1.msra.mxu0 %v472
      %540 = vmatprep.subr.mxu0 0.0
      %541 = vmatpush1.msra.mxu0 %v471
      %542 = vmatprep.subr.mxu0 0.0
      %543 = vmatpush1.msra.mxu0 %v470
      %544 = vmatprep.subr.mxu0 0.0
      %545 = vmatpush1.msra.mxu0 %v469
      %546 = vmatprep.subr.mxu0 0.0
      %547 = vmatpush2.msra.mxu0 %v500
      %548 = vmatprep.subr.mxu0 0.0
      %549 = vmatpush2.msra.mxu0 %v499
      %550 = vmatprep.subr.mxu0 0.0
      %551 = vmatpush2.msra.mxu0 %v498
      %552 = vmatprep.subr.mxu0 0.0
      %553 = vmatpush2.msra.mxu0 %v497
      %554 = vmatprep.subr.mxu0 0.0
      %555 = vmatpush2.msra.mxu0 %v496
      %556 = vmatprep.subr.mxu0 0.0
      %557 = vmatpush2.msra.mxu0 %v495
      %558 = vmatprep.subr.mxu0 0.0
      %559 = vmatpush2.msra.mxu0 %v494
      %560 = vmatprep.subr.mxu0 0.0
      %561 = vmatpush2.msra.mxu0 %v493
      %562 = vmatprep.subr.mxu0 0.0
      %563 = vmatpush2.msra.mxu0 %v492
      %564 = vmatprep.subr.mxu0 0.0
      %565 = vmatpush2.msra.mxu0 %v491
      %566 = vmatprep.subr.mxu0 0.0
      %567 = vmatpush2.msra.mxu0 %v490
      %568 = vmatprep.subr.mxu0 0.0
      %569 = vmatpush2.msra.mxu0 %v489
      %570 = vmatprep.subr.mxu0 0.0
      %571 = vmatpush2.msra.mxu0 %v488
      %572 = vmatprep.subr.mxu0 0.0
      %573 = vmatpush2.msra.mxu0 %v487
      %574 = vmatprep.subr.mxu0 0.0
      %575 = vmatpush2.msra.mxu0 %v486
      %576 = vmatprep.subr.mxu0 0.0
      %577 = vmatpush2.msra.mxu0 %v485
      %578 = vmatprep.mubr.f32.mxu0 %v511
      %579 = vmatmul.mubr.f32.gmra.mxu0 %v508
      %v580 = vpop.f32.mrf.mxu0
      %v581 = vadd.f32 0.0, %v580
      %v582 = vpop.f32.mrf.mxu0
      %583 = vdwg.mxu0
      %584 = vmatprep.subr.mxu0 0.0
      %585 = vmatpush1.msra.mxu0 %v447
      %586 = vmatprep.subr.mxu0 0.0
      %587 = vmatpush1.msra.mxu0 %v446
      %588 = vmatprep.subr.mxu0 0.0
      %589 = vmatpush1.msra.mxu0 %v445
      %590 = vmatprep.subr.mxu0 0.0
      %591 = vmatpush1.msra.mxu0 %v444
      %592 = vmatprep.subr.mxu0 0.0
      %593 = vmatpush1.msra.mxu0 %v443
      %594 = vmatprep.subr.mxu0 0.0
      %595 = vmatpush1.msra.mxu0 %v442
      %596 = vmatprep.subr.mxu0 0.0
      %597 = vmatpush1.msra.mxu0 %v441
      %598 = vmatprep.subr.mxu0 0.0
      %599 = vmatpush1.msra.mxu0 %v440
      %600 = vmatprep.subr.mxu0 0.0
      %601 = vmatpush1.msra.mxu0 %v439
      %602 = vmatprep.subr.mxu0 0.0
      %603 = vmatpush1.msra.mxu0 %v438
      %604 = vmatprep.subr.mxu0 0.0
      %605 = vmatpush1.msra.mxu0 %v437
      %606 = vmatprep.subr.mxu0 0.0
      %607 = vmatpush1.msra.mxu0 %v436
      %608 = vmatprep.subr.mxu0 0.0
      %609 = vmatpush1.msra.mxu0 %v435
      %610 = vmatprep.subr.mxu0 0.0
      %611 = vmatpush1.msra.mxu0 %v434
      %612 = vmatprep.subr.mxu0 0.0
      %613 = vmatpush1.msra.mxu0 %v433
      %614 = vmatprep.subr.mxu0 0.0
      %615 = vmatpush1.msra.mxu0 %v432
      %616 = vmatprep.subr.mxu0 0.0
      %617 = vmatpush2.msra.mxu0 %v463
      %618 = vmatprep.subr.mxu0 0.0
      %619 = vmatpush2.msra.mxu0 %v462
      %620 = vmatprep.subr.mxu0 0.0
      %621 = vmatpush2.msra.mxu0 %v461
      %622 = vmatprep.subr.mxu0 0.0
      %623 = vmatpush2.msra.mxu0 %v460
      %624 = vmatprep.subr.mxu0 0.0
      %625 = vmatpush2.msra.mxu0 %v459
      %626 = vmatprep.subr.mxu0 0.0
      %627 = vmatpush2.msra.mxu0 %v458
      %628 = vmatprep.subr.mxu0 0.0
      %629 = vmatpush2.msra.mxu0 %v457
      %630 = vmatprep.subr.mxu0 0.0
      %631 = vmatpush2.msra.mxu0 %v456
      %632 = vmatprep.subr.mxu0 0.0
      %633 = vmatpush2.msra.mxu0 %v455
      %634 = vmatprep.subr.mxu0 0.0
      %635 = vmatpush2.msra.mxu0 %v454
      %636 = vmatprep.subr.mxu0 0.0
      %637 = vmatpush2.msra.mxu0 %v453
      %638 = vmatprep.subr.mxu0 0.0
      %639 = vmatpush2.msra.mxu0 %v452
      %640 = vmatprep.subr.mxu0 0.0
      %641 = vmatpush2.msra.mxu0 %v451
      %642 = vmatprep.subr.mxu0 0.0
      %643 = vmatpush2.msra.mxu0 %v450
      %644 = vmatprep.subr.mxu0 0.0
      %645 = vmatpush2.msra.mxu0 %v449
      %646 = vmatprep.subr.mxu0 0.0
      %647 = vmatpush2.msra.mxu0 %v448
      %648 = vmatprep.mubr.f32.mxu0 %v431
      %649 = vmatmul.mubr.f32.gmra.mxu0 %v430
      %v650 = vpop.f32.mrf.mxu0
      %v651 = vadd.f32 %v581, %v650
      %v652 = vpop.f32.mrf.mxu0
      %653 = vdwg.mxu0
      %v654 = vld [vmem:[#allocation2] sm:$0xfc]
      %v655 = vld [vmem:[#allocation2 + $0x8] sm:$0xfc]
      %v656 = vld [vmem:[#allocation2 + $0x10] sm:$0x3]
      %v657 = vld [vmem:[#allocation2 + $0x18] sm:$0x3]
      %s658 = scalar_lea.vmem %s4, 512
      %v659 = vld [vmem:[%s658] sm:$0xff]
      %v660 = vld [vmem:[%s658 + $0x8] sm:$0xff]
      %v661 = vld [vmem:[%s658 + $0x10] sm:$0xff]
      %v662 = vld [vmem:[%s658 + $0x18] sm:$0xff]
      %v663 = vld [vmem:[%s658 + $0x20] sm:$0xff]
      %v664 = vld [vmem:[%s658 + $0x28] sm:$0xff]
      %v665 = vld [vmem:[%s658 + $0x30] sm:$0xff]
      %v666 = vld [vmem:[%s658 + $0x38] sm:$0xff]
      %v667 = vld [vmem:[%s658 + $0x40] sm:$0xff]
      %v668 = vld [vmem:[%s658 + $0x48] sm:$0xff]
      %v669 = vld [vmem:[%s658 + $0x50] sm:$0xff]
      %v670 = vld [vmem:[%s658 + $0x58] sm:$0xff]
      %v671 = vld [vmem:[%s658 + $0x60] sm:$0xff]
      %v672 = vld [vmem:[%s658 + $0x68] sm:$0xff]
      %v673 = vld [vmem:[%s658 + $0x70] sm:$0xff]
      %v674 = vld [vmem:[%s658 + $0x78] sm:$0xff]
      %v675 = vld [vmem:[%s658 + $0x80] sm:$0xff]
      %v676 = vld [vmem:[%s658 + $0x88] sm:$0xff]
      %v677 = vld [vmem:[%s658 + $0x90] sm:$0xff]
      %v678 = vld [vmem:[%s658 + $0x98] sm:$0xff]
      %v679 = vld [vmem:[%s658 + $0xa0] sm:$0xff]
      %v680 = vld [vmem:[%s658 + $0xa8] sm:$0xff]
      %v681 = vld [vmem:[%s658 + $0xb0] sm:$0xff]
      %v682 = vld [vmem:[%s658 + $0xb8] sm:$0xff]
      %v683 = vld [vmem:[%s658 + $0xc0] sm:$0xff]
      %v684 = vld [vmem:[%s658 + $0xc8] sm:$0xff]
      %v685 = vld [vmem:[%s658 + $0xd0] sm:$0xff]
      %v686 = vld [vmem:[%s658 + $0xd8] sm:$0xff]
      %v687 = vld [vmem:[%s658 + $0xe0] sm:$0xff]
      %v688 = vld [vmem:[%s658 + $0xe8] sm:$0xff]
      %v689 = vld [vmem:[%s658 + $0xf0] sm:$0xff]
      %v690 = vld [vmem:[%s658 + $0xf8] sm:$0xff]
      %vm695 = vcmask 1045504
      %v696 = vrot.slane %v654, 2
      %v697 = vrot.slane %v656, 2
      %v698 = vsel %vm695, %v696, %v697
      %v699 = vrot.slane %v655, 2
      %v700 = vrot.slane %v657, 2
      %v701 = vsel %vm695, %v699, %v700
      %704 = vmatprep.subr.mxu0 0.0
      %705 = vmatpush1.msra.mxu0 %v674
      %706 = vmatprep.subr.mxu0 0.0
      %707 = vmatpush1.msra.mxu0 %v673
      %708 = vmatprep.subr.mxu0 0.0
      %709 = vmatpush1.msra.mxu0 %v672
      %710 = vmatprep.subr.mxu0 0.0
      %711 = vmatpush1.msra.mxu0 %v671
      %712 = vmatprep.subr.mxu0 0.0
      %713 = vmatpush1.msra.mxu0 %v670
      %714 = vmatprep.subr.mxu0 0.0
      %715 = vmatpush1.msra.mxu0 %v669
      %716 = vmatprep.subr.mxu0 0.0
      %717 = vmatpush1.msra.mxu0 %v668
      %718 = vmatprep.subr.mxu0 0.0
      %719 = vmatpush1.msra.mxu0 %v667
      %720 = vmatprep.subr.mxu0 0.0
      %721 = vmatpush1.msra.mxu0 %v666
      %722 = vmatprep.subr.mxu0 0.0
      %723 = vmatpush1.msra.mxu0 %v665
      %724 = vmatprep.subr.mxu0 0.0
      %725 = vmatpush1.msra.mxu0 %v664
      %726 = vmatprep.subr.mxu0 0.0
      %727 = vmatpush1.msra.mxu0 %v663
      %728 = vmatprep.subr.mxu0 0.0
      %729 = vmatpush1.msra.mxu0 %v662
      %730 = vmatprep.subr.mxu0 0.0
      %731 = vmatpush1.msra.mxu0 %v661
      %732 = vmatprep.subr.mxu0 0.0
      %733 = vmatpush1.msra.mxu0 %v660
      %734 = vmatprep.subr.mxu0 0.0
      %735 = vmatpush1.msra.mxu0 %v659
      %736 = vmatprep.subr.mxu0 0.0
      %737 = vmatpush2.msra.mxu0 %v690
      %738 = vmatprep.subr.mxu0 0.0
      %739 = vmatpush2.msra.mxu0 %v689
      %740 = vmatprep.subr.mxu0 0.0
      %741 = vmatpush2.msra.mxu0 %v688
      %742 = vmatprep.subr.mxu0 0.0
      %743 = vmatpush2.msra.mxu0 %v687
      %744 = vmatprep.subr.mxu0 0.0
      %745 = vmatpush2.msra.mxu0 %v686
      %746 = vmatprep.subr.mxu0 0.0
      %747 = vmatpush2.msra.mxu0 %v685
      %748 = vmatprep.subr.mxu0 0.0
      %749 = vmatpush2.msra.mxu0 %v684
      %750 = vmatprep.subr.mxu0 0.0
      %751 = vmatpush2.msra.mxu0 %v683
      %752 = vmatprep.subr.mxu0 0.0
      %753 = vmatpush2.msra.mxu0 %v682
      %754 = vmatprep.subr.mxu0 0.0
      %755 = vmatpush2.msra.mxu0 %v681
      %756 = vmatprep.subr.mxu0 0.0
      %757 = vmatpush2.msra.mxu0 %v680
      %758 = vmatprep.subr.mxu0 0.0
      %759 = vmatpush2.msra.mxu0 %v679
      %760 = vmatprep.subr.mxu0 0.0
      %761 = vmatpush2.msra.mxu0 %v678
      %762 = vmatprep.subr.mxu0 0.0
      %763 = vmatpush2.msra.mxu0 %v677
      %764 = vmatprep.subr.mxu0 0.0
      %765 = vmatpush2.msra.mxu0 %v676
      %766 = vmatprep.subr.mxu0 0.0
      %767 = vmatpush2.msra.mxu0 %v675
      %768 = vmatprep.mubr.f32.mxu0 %v701
      %769 = vmatmul.mubr.f32.gmra.mxu0 %v698
      %v770 = vpop.f32.mrf.mxu0
      %v771 = vadd.f32 0.0, %v770
      %v772 = vpop.f32.mrf.mxu0
      %773 = vdwg.mxu0
      %v774 = vadd.f32 %v651, %v771
      %v775 = vld [vmem:[%s5] sm:$0x1]
      %v777 = vlaneseq
      %v778 = vshrl.u32 %v777, 7
      %v779 = vsub.s32 0, %v778
      %v780 = vrot.slane %v775, %v779
      %v782 = vadd.f32 %v774, %v780
      %v783 = vmax.f32 %v782, 0.0
      %784 = vst [vmem:[#allocation3 + $0x1] sm:$0xff] %v783
      %v785 = vld [vmem:[#allocation3] sm:$0xff]
      %v786 = vld [vmem:[%s6] sm:$0xff]
      %v787 = vld [vmem:[%s6 + $0x8] sm:$0xff]
      %v788 = vld [vmem:[%s6 + $0x10] sm:$0xff]
      %v789 = vld [vmem:[%s6 + $0x18] sm:$0xff]
      %v790 = vld [vmem:[%s6 + $0x20] sm:$0xff]
      %v791 = vld [vmem:[%s6 + $0x28] sm:$0xff]
      %v792 = vld [vmem:[%s6 + $0x30] sm:$0xff]
      %v793 = vld [vmem:[%s6 + $0x38] sm:$0xff]
      %v794 = vld [vmem:[%s6 + $0x40] sm:$0xff]
      %v795 = vld [vmem:[%s6 + $0x48] sm:$0xff]
      %v796 = vld [vmem:[%s6 + $0x50] sm:$0xff]
      %v797 = vld [vmem:[%s6 + $0x58] sm:$0xff]
      %v798 = vld [vmem:[%s6 + $0x60] sm:$0xff]
      %v799 = vld [vmem:[%s6 + $0x68] sm:$0xff]
      %v800 = vld [vmem:[%s6 + $0x70] sm:$0xff]
      %v801 = vld [vmem:[%s6 + $0x78] sm:$0xff]
      %v802 = vld [vmem:[#allocation3 + $0x1] sm:$0xff]
      %s803 = scalar_lea.vmem %s6, 128
      %v804 = vld [vmem:[%s803] sm:$0xff]
      %v805 = vld [vmem:[%s803 + $0x8] sm:$0xff]
      %v806 = vld [vmem:[%s803 + $0x10] sm:$0xff]
      %v807 = vld [vmem:[%s803 + $0x18] sm:$0xff]
      %v808 = vld [vmem:[%s803 + $0x20] sm:$0xff]
      %v809 = vld [vmem:[%s803 + $0x28] sm:$0xff]
      %v810 = vld [vmem:[%s803 + $0x30] sm:$0xff]
      %v811 = vld [vmem:[%s803 + $0x38] sm:$0xff]
      %v812 = vld [vmem:[%s803 + $0x40] sm:$0xff]
      %v813 = vld [vmem:[%s803 + $0x48] sm:$0xff]
      %v814 = vld [vmem:[%s803 + $0x50] sm:$0xff]
      %v815 = vld [vmem:[%s803 + $0x58] sm:$0xff]
      %v816 = vld [vmem:[%s803 + $0x60] sm:$0xff]
      %v817 = vld [vmem:[%s803 + $0x68] sm:$0xff]
      %v818 = vld [vmem:[%s803 + $0x70] sm:$0xff]
      %v819 = vld [vmem:[%s803 + $0x78] sm:$0xff]
      %820 = vmatprep.subr.mxu0 0.0
      %821 = vmatpush1.msra.mxu0 %v819
      %822 = vmatprep.subr.mxu0 0.0
      %823 = vmatpush1.msra.mxu0 %v818
      %824 = vmatprep.subr.mxu0 0.0
      %825 = vmatpush1.msra.mxu0 %v817
      %826 = vmatprep.subr.mxu0 0.0
      %827 = vmatpush1.msra.mxu0 %v816
      %828 = vmatprep.subr.mxu0 0.0
      %829 = vmatpush1.msra.mxu0 %v815
      %830 = vmatprep.subr.mxu0 0.0
      %831 = vmatpush1.msra.mxu0 %v814
      %832 = vmatprep.subr.mxu0 0.0
      %833 = vmatpush1.msra.mxu0 %v813
      %834 = vmatprep.subr.mxu0 0.0
      %835 = vmatpush1.msra.mxu0 %v812
      %836 = vmatprep.subr.mxu0 0.0
      %837 = vmatpush1.msra.mxu0 %v811
      %838 = vmatprep.subr.mxu0 0.0
      %839 = vmatpush1.msra.mxu0 %v810
      %840 = vmatprep.subr.mxu0 0.0
      %841 = vmatpush1.msra.mxu0 %v809
      %842 = vmatprep.subr.mxu0 0.0
      %843 = vmatpush1.msra.mxu0 %v808
      %844 = vmatprep.subr.mxu0 0.0
      %845 = vmatpush1.msra.mxu0 %v807
      %846 = vmatprep.subr.mxu0 0.0
      %847 = vmatpush1.msra.mxu0 %v806
      %848 = vmatprep.subr.mxu0 0.0
      %849 = vmatpush1.msra.mxu0 %v805
      %850 = vmatprep.subr.mxu0 0.0
      %851 = vmatpush1.msra.mxu0 %v804
      %852 = vmatprep.subr.mxu0 0.0
      %853 = vmatpush2.msra.mxu0 0.0
      %854 = vmatprep.subr.mxu0 0.0
      %855 = vmatpush2.msra.mxu0 0.0
      %856 = vmatprep.subr.mxu0 0.0
      %857 = vmatpush2.msra.mxu0 0.0
      %858 = vmatprep.subr.mxu0 0.0
      %859 = vmatpush2.msra.mxu0 0.0
      %860 = vmatprep.subr.mxu0 0.0
      %861 = vmatpush2.msra.mxu0 0.0
      %862 = vmatprep.subr.mxu0 0.0
      %863 = vmatpush2.msra.mxu0 0.0
      %864 = vmatprep.subr.mxu0 0.0
      %865 = vmatpush2.msra.mxu0 0.0
      %866 = vmatprep.subr.mxu0 0.0
      %867 = vmatpush2.msra.mxu0 0.0
      %868 = vmatprep.subr.mxu0 0.0
      %869 = vmatpush2.msra.mxu0 0.0
      %870 = vmatprep.subr.mxu0 0.0
      %871 = vmatpush2.msra.mxu0 0.0
      %872 = vmatprep.subr.mxu0 0.0
      %873 = vmatpush2.msra.mxu0 0.0
      %874 = vmatprep.subr.mxu0 0.0
      %875 = vmatpush2.msra.mxu0 0.0
      %876 = vmatprep.subr.mxu0 0.0
      %877 = vmatpush2.msra.mxu0 0.0
      %878 = vmatprep.subr.mxu0 0.0
      %879 = vmatpush2.msra.mxu0 0.0
      %880 = vmatprep.subr.mxu0 0.0
      %881 = vmatpush2.msra.mxu0 0.0
      %882 = vmatprep.subr.mxu0 0.0
      %883 = vmatpush2.msra.mxu0 0.0
      %884 = vmatprep.mubr.f32.mxu0 0.0
      %885 = vmatmul.mubr.f32.gmra.mxu0 %v802
      %v886 = vpop.f32.mrf.mxu0
      %v887 = vadd.f32 0.0, %v886
      %v888 = vpop.f32.mrf.mxu0
      %889 = vdwg.mxu0
      %890 = vmatprep.subr.mxu0 0.0
      %891 = vmatpush1.msra.mxu0 %v801
      %892 = vmatprep.subr.mxu0 0.0
      %893 = vmatpush1.msra.mxu0 %v800
      %894 = vmatprep.subr.mxu0 0.0
      %895 = vmatpush1.msra.mxu0 %v799
      %896 = vmatprep.subr.mxu0 0.0
      %897 = vmatpush1.msra.mxu0 %v798
      %898 = vmatprep.subr.mxu0 0.0
      %899 = vmatpush1.msra.mxu0 %v797
      %900 = vmatprep.subr.mxu0 0.0
      %901 = vmatpush1.msra.mxu0 %v796
      %902 = vmatprep.subr.mxu0 0.0
      %903 = vmatpush1.msra.mxu0 %v795
      %904 = vmatprep.subr.mxu0 0.0
      %905 = vmatpush1.msra.mxu0 %v794
      %906 = vmatprep.subr.mxu0 0.0
      %907 = vmatpush1.msra.mxu0 %v793
      %908 = vmatprep.subr.mxu0 0.0
      %909 = vmatpush1.msra.mxu0 %v792
      %910 = vmatprep.subr.mxu0 0.0
      %911 = vmatpush1.msra.mxu0 %v791
      %912 = vmatprep.subr.mxu0 0.0
      %913 = vmatpush1.msra.mxu0 %v790
      %914 = vmatprep.subr.mxu0 0.0
      %915 = vmatpush1.msra.mxu0 %v789
      %916 = vmatprep.subr.mxu0 0.0
      %917 = vmatpush1.msra.mxu0 %v788
      %918 = vmatprep.subr.mxu0 0.0
      %919 = vmatpush1.msra.mxu0 %v787
      %920 = vmatprep.subr.mxu0 0.0
      %921 = vmatpush1.msra.mxu0 %v786
      %922 = vmatprep.subr.mxu0 0.0
      %923 = vmatpush2.msra.mxu0 0.0
      %924 = vmatprep.subr.mxu0 0.0
      %925 = vmatpush2.msra.mxu0 0.0
      %926 = vmatprep.subr.mxu0 0.0
      %927 = vmatpush2.msra.mxu0 0.0
      %928 = vmatprep.subr.mxu0 0.0
      %929 = vmatpush2.msra.mxu0 0.0
      %930 = vmatprep.subr.mxu0 0.0
      %931 = vmatpush2.msra.mxu0 0.0
      %932 = vmatprep.subr.mxu0 0.0
      %933 = vmatpush2.msra.mxu0 0.0
      %934 = vmatprep.subr.mxu0 0.0
      %935 = vmatpush2.msra.mxu0 0.0
      %936 = vmatprep.subr.mxu0 0.0
      %937 = vmatpush2.msra.mxu0 0.0
      %938 = vmatprep.subr.mxu0 0.0
      %939 = vmatpush2.msra.mxu0 0.0
      %940 = vmatprep.subr.mxu0 0.0
      %941 = vmatpush2.msra.mxu0 0.0
      %942 = vmatprep.subr.mxu0 0.0
      %943 = vmatpush2.msra.mxu0 0.0
      %944 = vmatprep.subr.mxu0 0.0
      %945 = vmatpush2.msra.mxu0 0.0
      %946 = vmatprep.subr.mxu0 0.0
      %947 = vmatpush2.msra.mxu0 0.0
      %948 = vmatprep.subr.mxu0 0.0
      %949 = vmatpush2.msra.mxu0 0.0
      %950 = vmatprep.subr.mxu0 0.0
      %951 = vmatpush2.msra.mxu0 0.0
      %952 = vmatprep.subr.mxu0 0.0
      %953 = vmatpush2.msra.mxu0 0.0
      %954 = vmatprep.mubr.f32.mxu0 0.0
      %955 = vmatmul.mubr.f32.gmra.mxu0 %v785
      %v956 = vpop.f32.mrf.mxu0
      %v957 = vadd.f32 %v887, %v956
      %v958 = vpop.f32.mrf.mxu0
      %959 = vdwg.mxu0
      %v960 = vld [vmem:[#allocation3 + $0x2] sm:$0xff]
      %s961 = scalar_lea.vmem %s6, 256
      %v962 = vld [vmem:[%s961] sm:$0xff]
      %v963 = vld [vmem:[%s961 + $0x8] sm:$0xff]
      %v964 = vld [vmem:[%s961 + $0x10] sm:$0xff]
      %v965 = vld [vmem:[%s961 + $0x18] sm:$0xff]
      %v966 = vld [vmem:[%s961 + $0x20] sm:$0xff]
      %v967 = vld [vmem:[%s961 + $0x28] sm:$0xff]
      %v968 = vld [vmem:[%s961 + $0x30] sm:$0xff]
      %v969 = vld [vmem:[%s961 + $0x38] sm:$0xff]
      %v970 = vld [vmem:[%s961 + $0x40] sm:$0xff]
      %v971 = vld [vmem:[%s961 + $0x48] sm:$0xff]
      %v972 = vld [vmem:[%s961 + $0x50] sm:$0xff]
      %v973 = vld [vmem:[%s961 + $0x58] sm:$0xff]
      %v974 = vld [vmem:[%s961 + $0x60] sm:$0xff]
      %v975 = vld [vmem:[%s961 + $0x68] sm:$0xff]
      %v976 = vld [vmem:[%s961 + $0x70] sm:$0xff]
      %v977 = vld [vmem:[%s961 + $0x78] sm:$0xff]
      %978 = vmatprep.subr.mxu0 0.0
      %979 = vmatpush1.msra.mxu0 %v977
      %980 = vmatprep.subr.mxu0 0.0
      %981 = vmatpush1.msra.mxu0 %v976
      %982 = vmatprep.subr.mxu0 0.0
      %983 = vmatpush1.msra.mxu0 %v975
      %984 = vmatprep.subr.mxu0 0.0
      %985 = vmatpush1.msra.mxu0 %v974
      %986 = vmatprep.subr.mxu0 0.0
      %987 = vmatpush1.msra.mxu0 %v973
      %988 = vmatprep.subr.mxu0 0.0
      %989 = vmatpush1.msra.mxu0 %v972
      %990 = vmatprep.subr.mxu0 0.0
      %991 = vmatpush1.msra.mxu0 %v971
      %992 = vmatprep.subr.mxu0 0.0
      %993 = vmatpush1.msra.mxu0 %v970
      %994 = vmatprep.subr.mxu0 0.0
      %995 = vmatpush1.msra.mxu0 %v969
      %996 = vmatprep.subr.mxu0 0.0
      %997 = vmatpush1.msra.mxu0 %v968
      %998 = vmatprep.subr.mxu0 0.0
      %999 = vmatpush1.msra.mxu0 %v967
      %1000 = vmatprep.subr.mxu0 0.0
      %1001 = vmatpush1.msra.mxu0 %v966
      %1002 = vmatprep.subr.mxu0 0.0
      %1003 = vmatpush1.msra.mxu0 %v965
      %1004 = vmatprep.subr.mxu0 0.0
      %1005 = vmatpush1.msra.mxu0 %v964
      %1006 = vmatprep.subr.mxu0 0.0
      %1007 = vmatpush1.msra.mxu0 %v963
      %1008 = vmatprep.subr.mxu0 0.0
      %1009 = vmatpush1.msra.mxu0 %v962
      %1010 = vmatprep.subr.mxu0 0.0
      %1011 = vmatpush2.msra.mxu0 0.0
      %1012 = vmatprep.subr.mxu0 0.0
      %1013 = vmatpush2.msra.mxu0 0.0
      %1014 = vmatprep.subr.mxu0 0.0
      %1015 = vmatpush2.msra.mxu0 0.0
      %1016 = vmatprep.subr.mxu0 0.0
      %1017 = vmatpush2.msra.mxu0 0.0
      %1018 = vmatprep.subr.mxu0 0.0
      %1019 = vmatpush2.msra.mxu0 0.0
      %1020 = vmatprep.subr.mxu0 0.0
      %1021 = vmatpush2.msra.mxu0 0.0
      %1022 = vmatprep.subr.mxu0 0.0
      %1023 = vmatpush2.msra.mxu0 0.0
      %1024 = vmatprep.subr.mxu0 0.0
      %1025 = vmatpush2.msra.mxu0 0.0
      %1026 = vmatprep.subr.mxu0 0.0
      %1027 = vmatpush2.msra.mxu0 0.0
      %1028 = vmatprep.subr.mxu0 0.0
      %1029 = vmatpush2.msra.mxu0 0.0
      %1030 = vmatprep.subr.mxu0 0.0
      %1031 = vmatpush2.msra.mxu0 0.0
      %1032 = vmatprep.subr.mxu0 0.0
      %1033 = vmatpush2.msra.mxu0 0.0
      %1034 = vmatprep.subr.mxu0 0.0
      %1035 = vmatpush2.msra.mxu0 0.0
      %1036 = vmatprep.subr.mxu0 0.0
      %1037 = vmatpush2.msra.mxu0 0.0
      %1038 = vmatprep.subr.mxu0 0.0
      %1039 = vmatpush2.msra.mxu0 0.0
      %1040 = vmatprep.subr.mxu0 0.0
      %1041 = vmatpush2.msra.mxu0 0.0
      %1042 = vmatprep.mubr.f32.mxu0 0.0
      %1043 = vmatmul.mubr.f32.gmra.mxu0 %v960
      %v1044 = vpop.f32.mrf.mxu0
      %v1045 = vadd.f32 0.0, %v1044
      %v1046 = vpop.f32.mrf.mxu0
      %1047 = vdwg.mxu0
      %v1048 = vadd.f32 %v957, %v1045
      %v1049 = vld [vmem:[%s7] sm:$0x1]
      %v1051 = vlaneseq
      %v1052 = vshrl.u32 %v1051, 7
      %v1053 = vsub.s32 0, %v1052
      %v1054 = vrot.slane %v1049, %v1053
      %v1056 = vadd.f32 %v1048, %v1054
      %v1057 = vmax.f32 %v1056, 0.0
      %1058 = vst [vmem:[%s317] sm:$0xff] %v1057
      %p1059 = scmp.lt.s32.totalorder %s19, 1
      %s1060 = scalar_select %p1059, %s19, 1
      %s1061 = smul.addr %s1060, 8
      %s1062 = scalar_lea.vmem %s8, %s1061
      // Predicated region
      $region53: #{decoder_forward.1} parent=51 // pred_check
        %p1063 = pneg %p215
      $region54: #{decoder_forward.1} parent=51 // pred_check_branch
        %1065 = sbr.rel (%p1063) target = $region56
      $region55: #{decoder_forward.1} parent=51 // pred_region
        _
      $region56: #{decoder_forward.1} parent=51 // pred_fallthru
        _
    $region52: #{decoder_forward.1} parent=5 // pred_fallthru
      _
    %p1066 = scmp.le.s32.totalorder 2, %s14
    // Predicated region
    $region57: #{decoder_forward.1} parent=5 // pred_check
      %p1067 = pneg %p1066
    $region58: #{decoder_forward.1} parent=5 // pred_check_branch
      %1069 = sbr.rel (%p1067) target = $region60
    $region59: #{decoder_forward.1} parent=5 // pred_region
      %s1070 = ssub.s32 %s14, 2
      // Predicated region
      $region61: #{decoder_forward.1} parent=59 // pred_check
        %p1071 = pneg %p221
      $region62: #{decoder_forward.1} parent=59 // pred_check_branch
        %1073 = sbr.rel (%p1071) target = $region64
      $region63: #{decoder_forward.1} parent=59 // pred_region
        %p1074 = scmp.lt.s32.totalorder %s20, 1
        %s1075 = scalar_select %p1074, %s20, 1
        %s1076 = smul.addr %s1075, 8
        %s1077 = scalar_lea.vmem %s8, %s1076
      $region64: #{decoder_forward.1} parent=59 // pred_fallthru
        _
    $region60: #{decoder_forward.1} parent=5 // pred_fallthru
      _
  $region6: #{decoder_forward.1} parent=0 // loop_footer
    %s18 = sadd.s32 1, %s14
  $region7: #{decoder_forward.1} parent=0 // loop_footer_branch
    %13 = sbr.rel target = $region3
  $region8: #{decoder_forward.1} parent=0 // loop_exit
    _

</llo_original>
